<compile_context>
chip_gen: v5e
topology: v5e:2x2
jax: 0.10.0
libtpu: 0.0.40
codegen_flags: <defaults>
</compile_context>

<pallas_src>
import functools

import jax
import jax.numpy as jnp
from jax import lax
from jax.experimental import pallas as pl
from jax.experimental.pallas import tpu as pltpu

PACK = 4  # batch rows packed per lane group (4 * H=32 -> 128 lanes)


def gru_fc_kernel(T, x_ref, wih_ref, whh_ref, b_gates_ref, b_hn_ref,
                  wfc_ref, bfc_ref, out_ref, gx_ref):
    """Packed GRU recurrence + final Linear for one batch block.

    x_ref      : (T, P, PACK*I)   time-major, 4 batch rows packed along lanes
    wih_ref    : (PACK*I, 3*HP)   block-diag per-gate input weights [r|z|n]
    whh_ref    : (HP, 3*HP)       block-diag per-gate hidden weights [r|z|n]
    b_gates_ref: (1, 3*HP)        folded biases [b_ir+b_hr | b_iz+b_hz | b_in]
    b_hn_ref   : (1, HP)          hidden-side bias of the n gate
    wfc_ref    : (HP, HP)         block-diag fc weight;  bfc_ref: (1, HP)
    out_ref    : (P, HP)          packed output (view of (4P, H))
    gx_ref     : (T*P, 3*HP) f32  VMEM scratch for the hoisted projection
    """
    _, P, KI = x_ref.shape
    HP = out_ref.shape[1]
    mxu_dtype = wih_ref.dtype

    # ---- Hoisted, fused input projection: one tall MXU matmul ------------
    x_flat = x_ref[...].reshape(T * P, KI)
    gx_ref[...] = (jnp.dot(x_flat, wih_ref[...],
                           preferred_element_type=jnp.float32)
                   + b_gates_ref[...])

    whh = whh_ref[...]
    b_hn = b_hn_ref[...]
    wfc = wfc_ref[...]

    # ---- Recurrence: one fused hidden matmul per step --------------------
    def step(t, h):
        gh = jnp.dot(h.astype(mxu_dtype), whh,
                     preferred_element_type=jnp.float32)          # (P, 3*HP)
        row0 = pl.multiple_of(t * P, 8)
        gx_t = gx_ref[pl.ds(row0, P), :]                          # contiguous
        r = jax.nn.sigmoid(gx_t[:, 0:HP] + gh[:, 0:HP])
        z = jax.nn.sigmoid(gx_t[:, HP:2 * HP] + gh[:, HP:2 * HP])
        n = jnp.tanh(gx_t[:, 2 * HP:] + r * (gh[:, 2 * HP:] + b_hn))
        return (1.0 - z) * n + z * h

    h = lax.fori_loop(0, T, step, jnp.zeros((P, HP), jnp.float32), unroll=True)

    # ---- Final Linear (lane-dense packed store) ---------------------------
    out_ref[...] = (jnp.dot(h.astype(mxu_dtype), wfc,
                            preferred_element_type=jnp.float32)
                    + bfc_ref[...]).astype(out_ref.dtype)


def _round_up(a, b):
    return ((a + b - 1) // b) * b


def _block_diag(w, pack):
    """w: (K, M) -> (pack*K, pack*M) block-diagonal with w repeated."""
    K, M = w.shape
    eye = jnp.eye(pack, dtype=w.dtype)
    a = eye[:, :, None, None] * w[None, None, :, :]        # (pack, pack, K, M)
    return jnp.transpose(a, (0, 2, 1, 3)).reshape(pack * K, pack * M)


def matrix_encoder_forward(x, params, *, use_bf16=True):
    """x: (B, C, F, L+1) float32 -> (B*C, H) float32."""
    B, C, T, I = x.shape
    N = B * C
    H = params["w_hh"].shape[1]
    HP = PACK * H
    mxu_dtype = jnp.bfloat16 if use_bf16 else jnp.float32

    # ---- Batch tiling: big tiles, but >=2 grid steps for medium/large N so
    #      both v7x TensorCores get work via the "parallel" grid axis.
    unit = 8 * PACK                      # packed rows stay sublane-aligned
    cap = 512                            # per-step overhead amortized >~85%
    tn = max(unit, min(_round_up(pl.cdiv(N, 2), unit), cap))
    N_pad = _round_up(N, tn)
    P_blk = tn // PACK
    grid = (N_pad // tn,)

    # ---- Pack input: 4 consecutive batch rows along lanes, time-major ----
    x_seq = x.reshape(N, T, I).astype(jnp.float32)
    if N_pad != N:
        x_seq = jnp.pad(x_seq, ((0, N_pad - N), (0, 0), (0, 0)))
    x_packed = x_seq.reshape(N_pad // PACK, PACK, T, I)
    x_packed = jnp.transpose(x_packed, (2, 0, 1, 3))
    x_packed = x_packed.reshape(T, N_pad // PACK, PACK * I).astype(mxu_dtype)

    # ---- Pack weights: per-gate block-diagonal slabs, gate-fused ----------
    w_ih = params["w_ih"]                       # (3H, I), gate order [r|z|n]
    w_hh = params["w_hh"]                       # (3H, H)
    b_ih = params["b_ih"].astype(jnp.float32)
    b_hh = params["b_hh"].astype(jnp.float32)

    def gate(w, g):
        return w[g * H:(g + 1) * H, :]

    wih_packed = jnp.concatenate(
        [_block_diag(gate(w_ih, g).T, PACK) for g in range(3)],
        axis=1).astype(mxu_dtype)               # (PACK*I, 3*HP)
    whh_packed = jnp.concatenate(
        [_block_diag(gate(w_hh, g).T, PACK) for g in range(3)],
        axis=1).astype(mxu_dtype)               # (HP, 3*HP)

    def tile_b(b):                              # (H,) -> (1, HP), repeated
        return jnp.tile(b.reshape(1, H), (1, PACK))

    # Hidden-side biases of r/z folded into the hoisted input-side biases;
    # b_hn must stay inside r * (W_hn h + b_hn).
    b_gates = jnp.concatenate(
        [tile_b(b_ih[0:H] + b_hh[0:H]),
         tile_b(b_ih[H:2 * H] + b_hh[H:2 * H]),
         tile_b(b_ih[2 * H:3 * H])], axis=1)    # (1, 3*HP) f32
    b_hn = tile_b(b_hh[2 * H:3 * H])            # (1, HP)   f32

    wfc_packed = _block_diag(params["w_fc"].T, PACK).astype(mxu_dtype)  # (HP,HP)
    bfc_packed = tile_b(params["b_fc"].astype(jnp.float32))             # (1,HP)

    def full2d(shape):                          # resident weights / biases
        return pl.BlockSpec(shape, lambda i: (0, 0))

    # NOTE: if H or T is scaled up, budget VMEM explicitly (vmem_limit_bytes,
    # single-buffered weight specs); at these sizes everything is tiny.
    out = pl.pallas_call(
        functools.partial(gru_fc_kernel, T),
        out_shape=jax.ShapeDtypeStruct((N_pad // PACK, HP), jnp.float32),
        grid=grid,
        in_specs=[
            pl.BlockSpec((T, P_blk, PACK * I), lambda i: (0, i, 0)),  # x
            full2d((PACK * I, 3 * HP)),                               # w_ih
            full2d((HP, 3 * HP)),                                     # w_hh
            full2d((1, 3 * HP)),                                      # b_gates
            full2d((1, HP)),                                          # b_hn
            full2d((HP, HP)),                                         # w_fc
            full2d((1, HP)),                                          # b_fc
        ],
        out_specs=pl.BlockSpec((P_blk, HP), lambda i: (i, 0)),
        scratch_shapes=[pltpu.VMEM((T * P_blk, 3 * HP), jnp.float32)],
        compiler_params=pltpu.CompilerParams(
            dimension_semantics=("parallel",)),
    )(x_packed, wih_packed, whh_packed, b_gates, b_hn, wfc_packed, bfc_packed)

    # (N_pad//PACK, PACK*H) row-major is exactly (N_pad, H): pure view.
    return out.reshape(N_pad, H)[:N]


def matrix_encoder_reference(x, params, *, mxu_dtype=jnp.float32):
    """Pure-JAX reference mirroring torch.nn.GRU + Linear.

    `mxu_dtype` reproduces the kernel's reduced-precision matmul operands
    (bf16) while keeping the carry and gate math in f32.
    """
    B, C, T, I = x.shape
    N = B * C
    H = params["w_hh"].shape[1]
    xs = x.reshape(N, T, I).astype(mxu_dtype)

    w_ih = params["w_ih"].astype(mxu_dtype)
    w_hh = params["w_hh"].astype(mxu_dtype)
    b_ih = params["b_ih"].astype(jnp.float32)
    b_hh = params["b_hh"].astype(jnp.float32)
    w_fc = params["w_fc"].astype(mxu_dtype)
    b_fc = params["b_fc"].astype(jnp.float32)

    def step(h, x_t):
        gx = jnp.dot(x_t, w_ih.T, preferred_element_type=jnp.float32) + b_ih
        gh = jnp.dot(h.astype(mxu_dtype), w_hh.T,
                     preferred_element_type=jnp.float32) + b_hh
        r = jax.nn.sigmoid(gx[:, :H] + gh[:, :H])
        z = jax.nn.sigmoid(gx[:, H:2 * H] + gh[:, H:2 * H])
        n = jnp.tanh(gx[:, 2 * H:] + r * gh[:, 2 * H:])
        return (1.0 - z) * n + z * h, None

    h0 = jnp.zeros((N, H), jnp.float32)
    h_n, _ = lax.scan(step, h0, jnp.transpose(xs, (1, 0, 2)))
    return jnp.dot(h_n.astype(mxu_dtype), w_fc.T,
                   preferred_element_type=jnp.float32) + b_fc


def init_params(key, input_size, hidden_size):
    """Deterministic uniform(-1/sqrt(H), 1/sqrt(H)) init (PyTorch-style)."""
    k = 1.0 / jnp.sqrt(jnp.float32(hidden_size))
    keys = jax.random.split(key, 6)
    u = lambda kk, shape: jax.random.uniform(kk, shape, jnp.float32, -k, k)
    return {
        "w_ih": u(keys[0], (3 * hidden_size, input_size)),
        "w_hh": u(keys[1], (3 * hidden_size, hidden_size)),
        "b_ih": u(keys[2], (3 * hidden_size,)),
        "b_hh": u(keys[3], (3 * hidden_size,)),
        "w_fc": u(keys[4], (hidden_size, hidden_size)),
        "b_fc": u(keys[5], (hidden_size,)),
    }


if __name__ == "__main__":
    # Small shapes consistent with the module: x (B, C, F, L+1)
    B, C, F_, L1 = 2, 4, 8, 16          # input_size = L+1 = 16, seq len = F = 8
    H = 32                               # hidden_size

    key = jax.random.PRNGKey(0)
    kx, kp = jax.random.split(key)
    x = jax.random.normal(kx, (B, C, F_, L1), jnp.float32)
    params = init_params(kp, input_size=L1, hidden_size=H)

    # f32 MXU path: tight check vs. the torch-equation reference.
    out_f32 = jax.block_until_ready(
        matrix_encoder_forward(x, params, use_bf16=False))
    ref_f32 = matrix_encoder_reference(x, params)
    assert out_f32.shape == (B * C, H), out_f32.shape
    assert jnp.allclose(out_f32, ref_f32, atol=1e-4, rtol=1e-4), \
        float(jnp.max(jnp.abs(out_f32 - ref_f32)))

    # bf16 MXU path (default on all generations, incl. v5e): tight check vs. a
    # bf16-operand reference, loose check vs. the f32 reference.
    out_bf16 = jax.block_until_ready(
        matrix_encoder_forward(x, params, use_bf16=True))
    ref_bf16 = matrix_encoder_reference(x, params, mxu_dtype=jnp.bfloat16)
    assert jnp.allclose(out_bf16, ref_bf16, atol=5e-3, rtol=5e-3), \
        float(jnp.max(jnp.abs(out_bf16 - ref_bf16)))
    assert jnp.allclose(out_bf16, ref_f32, atol=1e-1, rtol=1e-1), \
        float(jnp.max(jnp.abs(out_bf16 - ref_f32)))

    print("KERNEL_OK")
</pallas_src>

<mosaic_0001>
module attributes {stable_mosaic.version = 11 : i64} {
  func.func @gru_fc_kernel(%arg0: i32, %arg1: memref<8x8x64xf32, #tpu.memory_space<vmem>>, %arg2: memref<64x384xf32, #tpu.memory_space<vmem>>, %arg3: memref<128x384xf32, #tpu.memory_space<vmem>>, %arg4: memref<1x384xf32, #tpu.memory_space<vmem>>, %arg5: memref<1x128xf32, #tpu.memory_space<vmem>>, %arg6: memref<128x128xf32, #tpu.memory_space<vmem>>, %arg7: memref<1x128xf32, #tpu.memory_space<vmem>>, %arg8: memref<8x128xf32, #tpu.memory_space<vmem>>, %arg9: memref<64x384xf32, #tpu.memory_space<vmem>>) attributes {dimension_semantics = [#tpu.dimension_semantics<parallel>], iteration_bounds = array<i64: 1>, scalar_prefetch = 0 : i64, scratch_operands = 1 : i64, tpu.core_type = #tpu.core_type<tc>, window_params = [{transform_indices = @transform_0, window_bounds = array<i64: 8, 8, 64>}, {pipeline_mode = #tpu.pipeline_mode<synchronous>, transform_indices = @transform_1, window_bounds = array<i64: 64, 384>}, {pipeline_mode = #tpu.pipeline_mode<synchronous>, transform_indices = @transform_2, window_bounds = array<i64: 128, 384>}, {pipeline_mode = #tpu.pipeline_mode<synchronous>, transform_indices = @transform_3, window_bounds = array<i64: 1, 384>}, {pipeline_mode = #tpu.pipeline_mode<synchronous>, transform_indices = @transform_4, window_bounds = array<i64: 1, 128>}, {pipeline_mode = #tpu.pipeline_mode<synchronous>, transform_indices = @transform_5, window_bounds = array<i64: 128, 128>}, {pipeline_mode = #tpu.pipeline_mode<synchronous>, transform_indices = @transform_6, window_bounds = array<i64: 1, 128>}, {transform_indices = @transform_7, window_bounds = array<i64: 8, 128>}]} {
    %c0 = arith.constant 0 : index
    %c0_0 = arith.constant 0 : index
    %c0_1 = arith.constant 0 : index
    %0 = vector.load %arg1[%c0, %c0_0, %c0_1] : memref<8x8x64xf32, #tpu.memory_space<vmem>>, vector<8x8x64xf32>
    %1 = vector.shape_cast %0 : vector<8x8x64xf32> to vector<64x64xf32>
    %c0_2 = arith.constant 0 : index
    %c0_3 = arith.constant 0 : index
    %2 = vector.load %arg2[%c0_2, %c0_3] : memref<64x384xf32, #tpu.memory_space<vmem>>, vector<64x384xf32>
    %cst = arith.constant dense<0.000000e+00> : vector<64x384xf32>
    %3 = tpu.matmul %1, %2, %cst {dimension_numbers = #tpu.dot_dimension_numbers<[1], [0], [0], [1], [0, 0, 1, 1], [], []>} : vector<64x64xf32>, vector<64x384xf32>, vector<64x384xf32> -> vector<64x384xf32>
    %c0_4 = arith.constant 0 : index
    %c0_5 = arith.constant 0 : index
    %4 = vector.load %arg4[%c0_4, %c0_5] : memref<1x384xf32, #tpu.memory_space<vmem>>, vector<1x384xf32>
    %5 = vector.broadcast %4 : vector<1x384xf32> to vector<64x384xf32>
    %6 = arith.addf %3, %5 : vector<64x384xf32>
    %c0_6 = arith.constant 0 : index
    %c0_7 = arith.constant 0 : index
    %7 = vector.load %arg9[%c0_6, %c0_7] : memref<64x384xf32, #tpu.memory_space<vmem>>, vector<64x384xf32>
    tpu.vector_store %arg9[%c0_6, %c0_7], %6 {strides = array<i32>} : memref<64x384xf32, #tpu.memory_space<vmem>>, vector<64x384xf32>,
    %c0_8 = arith.constant 0 : index
    %c0_9 = arith.constant 0 : index
    %8 = vector.load %arg3[%c0_8, %c0_9] : memref<128x384xf32, #tpu.memory_space<vmem>>, vector<128x384xf32>
    %c0_10 = arith.constant 0 : index
    %c0_11 = arith.constant 0 : index
    %9 = vector.load %arg5[%c0_10, %c0_11] : memref<1x128xf32, #tpu.memory_space<vmem>>, vector<1x128xf32>
    %c0_12 = arith.constant 0 : index
    %c0_13 = arith.constant 0 : index
    %10 = vector.load %arg6[%c0_12, %c0_13] : memref<128x128xf32, #tpu.memory_space<vmem>>, vector<128x128xf32>
    %cst_14 = arith.constant 0.000000e+00 : f32
    %11 = vector.broadcast %cst_14 : f32 to vector<8x128xf32>
    %c0_i32 = arith.constant 0 : i32
    %cst_15 = arith.constant dense<0.000000e+00> : vector<8x384xf32>
    %12 = tpu.matmul %11, %8, %cst_15 {dimension_numbers = #tpu.dot_dimension_numbers<[1], [0], [0], [1], [0, 0, 1, 1], [], []>} : vector<8x128xf32>, vector<128x384xf32>, vector<8x384xf32> -> vector<8x384xf32>
    %c8_i32 = arith.constant 8 : i32
    %13 = arith.muli %c0_i32, %c8_i32 : i32
    %14 = tpu.assume_multiple %13, 8 : i32
    %15 = arith.index_cast %14 : i32 to index
    %c0_16 = arith.constant 0 : index
    %16 = vector.load %arg9[%15, %c0_16] : memref<64x384xf32, #tpu.memory_space<vmem>>, vector<8x384xf32>
    %17 = vector.extract_strided_slice %16 {offsets = [0, 0], sizes = [8, 128], strides = [1, 1]} : vector<8x384xf32> to vector<8x128xf32>
    %18 = vector.extract_strided_slice %12 {offsets = [0, 0], sizes = [8, 128], strides = [1, 1]} : vector<8x384xf32> to vector<8x128xf32>
    %19 = arith.addf %17, %18 : vector<8x128xf32>
    %20 = arith.negf %19 : vector<8x128xf32>
    %21 = math.exp %20 : vector<8x128xf32>
    %cst_17 = arith.constant 1.000000e+00 : f32
    %22 = vector.broadcast %cst_17 : f32 to vector<8x128xf32>
    %23 = arith.addf %22, %21 : vector<8x128xf32>
    %24 = arith.divf %22, %23 : vector<8x128xf32>
    %25 = vector.extract_strided_slice %16 {offsets = [0, 128], sizes = [8, 128], strides = [1, 1]} : vector<8x384xf32> to vector<8x128xf32>
    %26 = vector.extract_strided_slice %12 {offsets = [0, 128], sizes = [8, 128], strides = [1, 1]} : vector<8x384xf32> to vector<8x128xf32>
    %27 = arith.addf %25, %26 : vector<8x128xf32>
    %28 = arith.negf %27 : vector<8x128xf32>
    %29 = math.exp %28 : vector<8x128xf32>
    %cst_18 = arith.constant 1.000000e+00 : f32
    %30 = vector.broadcast %cst_18 : f32 to vector<8x128xf32>
    %31 = arith.addf %30, %29 : vector<8x128xf32>
    %32 = arith.divf %30, %31 : vector<8x128xf32>
    %33 = vector.extract_strided_slice %16 {offsets = [0, 256], sizes = [8, 128], strides = [1, 1]} : vector<8x384xf32> to vector<8x128xf32>
    %34 = vector.extract_strided_slice %12 {offsets = [0, 256], sizes = [8, 128], strides = [1, 1]} : vector<8x384xf32> to vector<8x128xf32>
    %35 = vector.broadcast %9 : vector<1x128xf32> to vector<8x128xf32>
    %36 = arith.addf %34, %35 : vector<8x128xf32>
    %37 = arith.mulf %24, %36 : vector<8x128xf32>
    %38 = arith.addf %33, %37 : vector<8x128xf32>
    %39 = math.tanh %38 : vector<8x128xf32>
    %cst_19 = arith.constant 1.000000e+00 : f32
    %40 = vector.broadcast %cst_19 : f32 to vector<8x128xf32>
    %41 = arith.subf %40, %32 : vector<8x128xf32>
    %42 = arith.mulf %41, %39 : vector<8x128xf32>
    %43 = arith.mulf %32, %11 : vector<8x128xf32>
    %44 = arith.addf %42, %43 : vector<8x128xf32>
    %c1_i32 = arith.constant 1 : i32
    %cst_20 = arith.constant dense<0.000000e+00> : vector<8x384xf32>
    %45 = tpu.matmul %44, %8, %cst_20 {dimension_numbers = #tpu.dot_dimension_numbers<[1], [0], [0], [1], [0, 0, 1, 1], [], []>} : vector<8x128xf32>, vector<128x384xf32>, vector<8x384xf32> -> vector<8x384xf32>
    %c8_i32_21 = arith.constant 8 : i32
    %46 = arith.muli %c1_i32, %c8_i32_21 : i32
    %47 = tpu.assume_multiple %46, 8 : i32
    %48 = arith.index_cast %47 : i32 to index
    %c0_22 = arith.constant 0 : index
    %49 = vector.load %arg9[%48, %c0_22] : memref<64x384xf32, #tpu.memory_space<vmem>>, vector<8x384xf32>
    %50 = vector.extract_strided_slice %49 {offsets = [0, 0], sizes = [8, 128], strides = [1, 1]} : vector<8x384xf32> to vector<8x128xf32>
    %51 = vector.extract_strided_slice %45 {offsets = [0, 0], sizes = [8, 128], strides = [1, 1]} : vector<8x384xf32> to vector<8x128xf32>
    %52 = arith.addf %50, %51 : vector<8x128xf32>
    %53 = arith.negf %52 : vector<8x128xf32>
    %54 = math.exp %53 : vector<8x128xf32>
    %cst_23 = arith.constant 1.000000e+00 : f32
    %55 = vector.broadcast %cst_23 : f32 to vector<8x128xf32>
    %56 = arith.addf %55, %54 : vector<8x128xf32>
    %57 = arith.divf %55, %56 : vector<8x128xf32>
    %58 = vector.extract_strided_slice %49 {offsets = [0, 128], sizes = [8, 128], strides = [1, 1]} : vector<8x384xf32> to vector<8x128xf32>
    %59 = vector.extract_strided_slice %45 {offsets = [0, 128], sizes = [8, 128], strides = [1, 1]} : vector<8x384xf32> to vector<8x128xf32>
    %60 = arith.addf %58, %59 : vector<8x128xf32>
    %61 = arith.negf %60 : vector<8x128xf32>
    %62 = math.exp %61 : vector<8x128xf32>
    %cst_24 = arith.constant 1.000000e+00 : f32
    %63 = vector.broadcast %cst_24 : f32 to vector<8x128xf32>
    %64 = arith.addf %63, %62 : vector<8x128xf32>
    %65 = arith.divf %63, %64 : vector<8x128xf32>
    %66 = vector.extract_strided_slice %49 {offsets = [0, 256], sizes = [8, 128], strides = [1, 1]} : vector<8x384xf32> to vector<8x128xf32>
    %67 = vector.extract_strided_slice %45 {offsets = [0, 256], sizes = [8, 128], strides = [1, 1]} : vector<8x384xf32> to vector<8x128xf32>
    %68 = vector.broadcast %9 : vector<1x128xf32> to vector<8x128xf32>
    %69 = arith.addf %67, %68 : vector<8x128xf32>
    %70 = arith.mulf %57, %69 : vector<8x128xf32>
    %71 = arith.addf %66, %70 : vector<8x128xf32>
    %72 = math.tanh %71 : vector<8x128xf32>
    %cst_25 = arith.constant 1.000000e+00 : f32
    %73 = vector.broadcast %cst_25 : f32 to vector<8x128xf32>
    %74 = arith.subf %73, %65 : vector<8x128xf32>
    %75 = arith.mulf %74, %72 : vector<8x128xf32>
    %76 = arith.mulf %65, %44 : vector<8x128xf32>
    %77 = arith.addf %75, %76 : vector<8x128xf32>
    %c2_i32 = arith.constant 2 : i32
    %cst_26 = arith.constant dense<0.000000e+00> : vector<8x384xf32>
    %78 = tpu.matmul %77, %8, %cst_26 {dimension_numbers = #tpu.dot_dimension_numbers<[1], [0], [0], [1], [0, 0, 1, 1], [], []>} : vector<8x128xf32>, vector<128x384xf32>, vector<8x384xf32> -> vector<8x384xf32>
    %c8_i32_27 = arith.constant 8 : i32
    %79 = arith.muli %c2_i32, %c8_i32_27 : i32
    %80 = tpu.assume_multiple %79, 8 : i32
    %81 = arith.index_cast %80 : i32 to index
    %c0_28 = arith.constant 0 : index
    %82 = vector.load %arg9[%81, %c0_28] : memref<64x384xf32, #tpu.memory_space<vmem>>, vector<8x384xf32>
    %83 = vector.extract_strided_slice %82 {offsets = [0, 0], sizes = [8, 128], strides = [1, 1]} : vector<8x384xf32> to vector<8x128xf32>
    %84 = vector.extract_strided_slice %78 {offsets = [0, 0], sizes = [8, 128], strides = [1, 1]} : vector<8x384xf32> to vector<8x128xf32>
    %85 = arith.addf %83, %84 : vector<8x128xf32>
    %86 = arith.negf %85 : vector<8x128xf32>
    %87 = math.exp %86 : vector<8x128xf32>
    %cst_29 = arith.constant 1.000000e+00 : f32
    %88 = vector.broadcast %cst_29 : f32 to vector<8x128xf32>
    %89 = arith.addf %88, %87 : vector<8x128xf32>
    %90 = arith.divf %88, %89 : vector<8x128xf32>
    %91 = vector.extract_strided_slice %82 {offsets = [0, 128], sizes = [8, 128], strides = [1, 1]} : vector<8x384xf32> to vector<8x128xf32>
    %92 = vector.extract_strided_slice %78 {offsets = [0, 128], sizes = [8, 128], strides = [1, 1]} : vector<8x384xf32> to vector<8x128xf32>
    %93 = arith.addf %91, %92 : vector<8x128xf32>
    %94 = arith.negf %93 : vector<8x128xf32>
    %95 = math.exp %94 : vector<8x128xf32>
    %cst_30 = arith.constant 1.000000e+00 : f32
    %96 = vector.broadcast %cst_30 : f32 to vector<8x128xf32>
    %97 = arith.addf %96, %95 : vector<8x128xf32>
    %98 = arith.divf %96, %97 : vector<8x128xf32>
    %99 = vector.extract_strided_slice %82 {offsets = [0, 256], sizes = [8, 128], strides = [1, 1]} : vector<8x384xf32> to vector<8x128xf32>
    %100 = vector.extract_strided_slice %78 {offsets = [0, 256], sizes = [8, 128], strides = [1, 1]} : vector<8x384xf32> to vector<8x128xf32>
    %101 = vector.broadcast %9 : vector<1x128xf32> to vector<8x128xf32>
    %102 = arith.addf %100, %101 : vector<8x128xf32>
    %103 = arith.mulf %90, %102 : vector<8x128xf32>
    %104 = arith.addf %99, %103 : vector<8x128xf32>
    %105 = math.tanh %104 : vector<8x128xf32>
    %cst_31 = arith.constant 1.000000e+00 : f32
    %106 = vector.broadcast %cst_31 : f32 to vector<8x128xf32>
    %107 = arith.subf %106, %98 : vector<8x128xf32>
    %108 = arith.mulf %107, %105 : vector<8x128xf32>
    %109 = arith.mulf %98, %77 : vector<8x128xf32>
    %110 = arith.addf %108, %109 : vector<8x128xf32>
    %c3_i32 = arith.constant 3 : i32
    %cst_32 = arith.constant dense<0.000000e+00> : vector<8x384xf32>
    %111 = tpu.matmul %110, %8, %cst_32 {dimension_numbers = #tpu.dot_dimension_numbers<[1], [0], [0], [1], [0, 0, 1, 1], [], []>} : vector<8x128xf32>, vector<128x384xf32>, vector<8x384xf32> -> vector<8x384xf32>
    %c8_i32_33 = arith.constant 8 : i32
    %112 = arith.muli %c3_i32, %c8_i32_33 : i32
    %113 = tpu.assume_multiple %112, 8 : i32
    %114 = arith.index_cast %113 : i32 to index
    %c0_34 = arith.constant 0 : index
    %115 = vector.load %arg9[%114, %c0_34] : memref<64x384xf32, #tpu.memory_space<vmem>>, vector<8x384xf32>
    %116 = vector.extract_strided_slice %115 {offsets = [0, 0], sizes = [8, 128], strides = [1, 1]} : vector<8x384xf32> to vector<8x128xf32>
    %117 = vector.extract_strided_slice %111 {offsets = [0, 0], sizes = [8, 128], strides = [1, 1]} : vector<8x384xf32> to vector<8x128xf32>
    %118 = arith.addf %116, %117 : vector<8x128xf32>
    %119 = arith.negf %118 : vector<8x128xf32>
    %120 = math.exp %119 : vector<8x128xf32>
    %cst_35 = arith.constant 1.000000e+00 : f32
    %121 = vector.broadcast %cst_35 : f32 to vector<8x128xf32>
    %122 = arith.addf %121, %120 : vector<8x128xf32>
    %123 = arith.divf %121, %122 : vector<8x128xf32>
    %124 = vector.extract_strided_slice %115 {offsets = [0, 128], sizes = [8, 128], strides = [1, 1]} : vector<8x384xf32> to vector<8x128xf32>
    %125 = vector.extract_strided_slice %111 {offsets = [0, 128], sizes = [8, 128], strides = [1, 1]} : vector<8x384xf32> to vector<8x128xf32>
    %126 = arith.addf %124, %125 : vector<8x128xf32>
    %127 = arith.negf %126 : vector<8x128xf32>
    %128 = math.exp %127 : vector<8x128xf32>
    %cst_36 = arith.constant 1.000000e+00 : f32
    %129 = vector.broadcast %cst_36 : f32 to vector<8x128xf32>
    %130 = arith.addf %129, %128 : vector<8x128xf32>
    %131 = arith.divf %129, %130 : vector<8x128xf32>
    %132 = vector.extract_strided_slice %115 {offsets = [0, 256], sizes = [8, 128], strides = [1, 1]} : vector<8x384xf32> to vector<8x128xf32>
    %133 = vector.extract_strided_slice %111 {offsets = [0, 256], sizes = [8, 128], strides = [1, 1]} : vector<8x384xf32> to vector<8x128xf32>
    %134 = vector.broadcast %9 : vector<1x128xf32> to vector<8x128xf32>
    %135 = arith.addf %133, %134 : vector<8x128xf32>
    %136 = arith.mulf %123, %135 : vector<8x128xf32>
    %137 = arith.addf %132, %136 : vector<8x128xf32>
    %138 = math.tanh %137 : vector<8x128xf32>
    %cst_37 = arith.constant 1.000000e+00 : f32
    %139 = vector.broadcast %cst_37 : f32 to vector<8x128xf32>
    %140 = arith.subf %139, %131 : vector<8x128xf32>
    %141 = arith.mulf %140, %138 : vector<8x128xf32>
    %142 = arith.mulf %131, %110 : vector<8x128xf32>
    %143 = arith.addf %141, %142 : vector<8x128xf32>
    %c4_i32 = arith.constant 4 : i32
    %cst_38 = arith.constant dense<0.000000e+00> : vector<8x384xf32>
    %144 = tpu.matmul %143, %8, %cst_38 {dimension_numbers = #tpu.dot_dimension_numbers<[1], [0], [0], [1], [0, 0, 1, 1], [], []>} : vector<8x128xf32>, vector<128x384xf32>, vector<8x384xf32> -> vector<8x384xf32>
    %c8_i32_39 = arith.constant 8 : i32
    %145 = arith.muli %c4_i32, %c8_i32_39 : i32
    %146 = tpu.assume_multiple %145, 8 : i32
    %147 = arith.index_cast %146 : i32 to index
    %c0_40 = arith.constant 0 : index
    %148 = vector.load %arg9[%147, %c0_40] : memref<64x384xf32, #tpu.memory_space<vmem>>, vector<8x384xf32>
    %149 = vector.extract_strided_slice %148 {offsets = [0, 0], sizes = [8, 128], strides = [1, 1]} : vector<8x384xf32> to vector<8x128xf32>
    %150 = vector.extract_strided_slice %144 {offsets = [0, 0], sizes = [8, 128], strides = [1, 1]} : vector<8x384xf32> to vector<8x128xf32>
    %151 = arith.addf %149, %150 : vector<8x128xf32>
    %152 = arith.negf %151 : vector<8x128xf32>
    %153 = math.exp %152 : vector<8x128xf32>
    %cst_41 = arith.constant 1.000000e+00 : f32
    %154 = vector.broadcast %cst_41 : f32 to vector<8x128xf32>
    %155 = arith.addf %154, %153 : vector<8x128xf32>
    %156 = arith.divf %154, %155 : vector<8x128xf32>
    %157 = vector.extract_strided_slice %148 {offsets = [0, 128], sizes = [8, 128], strides = [1, 1]} : vector<8x384xf32> to vector<8x128xf32>
    %158 = vector.extract_strided_slice %144 {offsets = [0, 128], sizes = [8, 128], strides = [1, 1]} : vector<8x384xf32> to vector<8x128xf32>
    %159 = arith.addf %157, %158 : vector<8x128xf32>
    %160 = arith.negf %159 : vector<8x128xf32>
    %161 = math.exp %160 : vector<8x128xf32>
    %cst_42 = arith.constant 1.000000e+00 : f32
    %162 = vector.broadcast %cst_42 : f32 to vector<8x128xf32>
    %163 = arith.addf %162, %161 : vector<8x128xf32>
    %164 = arith.divf %162, %163 : vector<8x128xf32>
    %165 = vector.extract_strided_slice %148 {offsets = [0, 256], sizes = [8, 128], strides = [1, 1]} : vector<8x384xf32> to vector<8x128xf32>
    %166 = vector.extract_strided_slice %144 {offsets = [0, 256], sizes = [8, 128], strides = [1, 1]} : vector<8x384xf32> to vector<8x128xf32>
    %167 = vector.broadcast %9 : vector<1x128xf32> to vector<8x128xf32>
    %168 = arith.addf %166, %167 : vector<8x128xf32>
    %169 = arith.mulf %156, %168 : vector<8x128xf32>
    %170 = arith.addf %165, %169 : vector<8x128xf32>
    %171 = math.tanh %170 : vector<8x128xf32>
    %cst_43 = arith.constant 1.000000e+00 : f32
    %172 = vector.broadcast %cst_43 : f32 to vector<8x128xf32>
    %173 = arith.subf %172, %164 : vector<8x128xf32>
    %174 = arith.mulf %173, %171 : vector<8x128xf32>
    %175 = arith.mulf %164, %143 : vector<8x128xf32>
    %176 = arith.addf %174, %175 : vector<8x128xf32>
    %c5_i32 = arith.constant 5 : i32
    %cst_44 = arith.constant dense<0.000000e+00> : vector<8x384xf32>
    %177 = tpu.matmul %176, %8, %cst_44 {dimension_numbers = #tpu.dot_dimension_numbers<[1], [0], [0], [1], [0, 0, 1, 1], [], []>} : vector<8x128xf32>, vector<128x384xf32>, vector<8x384xf32> -> vector<8x384xf32>
    %c8_i32_45 = arith.constant 8 : i32
    %178 = arith.muli %c5_i32, %c8_i32_45 : i32
    %179 = tpu.assume_multiple %178, 8 : i32
    %180 = arith.index_cast %179 : i32 to index
    %c0_46 = arith.constant 0 : index
    %181 = vector.load %arg9[%180, %c0_46] : memref<64x384xf32, #tpu.memory_space<vmem>>, vector<8x384xf32>
    %182 = vector.extract_strided_slice %181 {offsets = [0, 0], sizes = [8, 128], strides = [1, 1]} : vector<8x384xf32> to vector<8x128xf32>
    %183 = vector.extract_strided_slice %177 {offsets = [0, 0], sizes = [8, 128], strides = [1, 1]} : vector<8x384xf32> to vector<8x128xf32>
    %184 = arith.addf %182, %183 : vector<8x128xf32>
    %185 = arith.negf %184 : vector<8x128xf32>
    %186 = math.exp %185 : vector<8x128xf32>
    %cst_47 = arith.constant 1.000000e+00 : f32
    %187 = vector.broadcast %cst_47 : f32 to vector<8x128xf32>
    %188 = arith.addf %187, %186 : vector<8x128xf32>
    %189 = arith.divf %187, %188 : vector<8x128xf32>
    %190 = vector.extract_strided_slice %181 {offsets = [0, 128], sizes = [8, 128], strides = [1, 1]} : vector<8x384xf32> to vector<8x128xf32>
    %191 = vector.extract_strided_slice %177 {offsets = [0, 128], sizes = [8, 128], strides = [1, 1]} : vector<8x384xf32> to vector<8x128xf32>
    %192 = arith.addf %190, %191 : vector<8x128xf32>
    %193 = arith.negf %192 : vector<8x128xf32>
    %194 = math.exp %193 : vector<8x128xf32>
    %cst_48 = arith.constant 1.000000e+00 : f32
    %195 = vector.broadcast %cst_48 : f32 to vector<8x128xf32>
    %196 = arith.addf %195, %194 : vector<8x128xf32>
    %197 = arith.divf %195, %196 : vector<8x128xf32>
    %198 = vector.extract_strided_slice %181 {offsets = [0, 256], sizes = [8, 128], strides = [1, 1]} : vector<8x384xf32> to vector<8x128xf32>
    %199 = vector.extract_strided_slice %177 {offsets = [0, 256], sizes = [8, 128], strides = [1, 1]} : vector<8x384xf32> to vector<8x128xf32>
    %200 = vector.broadcast %9 : vector<1x128xf32> to vector<8x128xf32>
    %201 = arith.addf %199, %200 : vector<8x128xf32>
    %202 = arith.mulf %189, %201 : vector<8x128xf32>
    %203 = arith.addf %198, %202 : vector<8x128xf32>
    %204 = math.tanh %203 : vector<8x128xf32>
    %cst_49 = arith.constant 1.000000e+00 : f32
    %205 = vector.broadcast %cst_49 : f32 to vector<8x128xf32>
    %206 = arith.subf %205, %197 : vector<8x128xf32>
    %207 = arith.mulf %206, %204 : vector<8x128xf32>
    %208 = arith.mulf %197, %176 : vector<8x128xf32>
    %209 = arith.addf %207, %208 : vector<8x128xf32>
    %c6_i32 = arith.constant 6 : i32
    %cst_50 = arith.constant dense<0.000000e+00> : vector<8x384xf32>
    %210 = tpu.matmul %209, %8, %cst_50 {dimension_numbers = #tpu.dot_dimension_numbers<[1], [0], [0], [1], [0, 0, 1, 1], [], []>} : vector<8x128xf32>, vector<128x384xf32>, vector<8x384xf32> -> vector<8x384xf32>
    %c8_i32_51 = arith.constant 8 : i32
    %211 = arith.muli %c6_i32, %c8_i32_51 : i32
    %212 = tpu.assume_multiple %211, 8 : i32
    %213 = arith.index_cast %212 : i32 to index
    %c0_52 = arith.constant 0 : index
    %214 = vector.load %arg9[%213, %c0_52] : memref<64x384xf32, #tpu.memory_space<vmem>>, vector<8x384xf32>
    %215 = vector.extract_strided_slice %214 {offsets = [0, 0], sizes = [8, 128], strides = [1, 1]} : vector<8x384xf32> to vector<8x128xf32>
    %216 = vector.extract_strided_slice %210 {offsets = [0, 0], sizes = [8, 128], strides = [1, 1]} : vector<8x384xf32> to vector<8x128xf32>
    %217 = arith.addf %215, %216 : vector<8x128xf32>
    %218 = arith.negf %217 : vector<8x128xf32>
    %219 = math.exp %218 : vector<8x128xf32>
    %cst_53 = arith.constant 1.000000e+00 : f32
    %220 = vector.broadcast %cst_53 : f32 to vector<8x128xf32>
    %221 = arith.addf %220, %219 : vector<8x128xf32>
    %222 = arith.divf %220, %221 : vector<8x128xf32>
    %223 = vector.extract_strided_slice %214 {offsets = [0, 128], sizes = [8, 128], strides = [1, 1]} : vector<8x384xf32> to vector<8x128xf32>
    %224 = vector.extract_strided_slice %210 {offsets = [0, 128], sizes = [8, 128], strides = [1, 1]} : vector<8x384xf32> to vector<8x128xf32>
    %225 = arith.addf %223, %224 : vector<8x128xf32>
    %226 = arith.negf %225 : vector<8x128xf32>
    %227 = math.exp %226 : vector<8x128xf32>
    %cst_54 = arith.constant 1.000000e+00 : f32
    %228 = vector.broadcast %cst_54 : f32 to vector<8x128xf32>
    %229 = arith.addf %228, %227 : vector<8x128xf32>
    %230 = arith.divf %228, %229 : vector<8x128xf32>
    %231 = vector.extract_strided_slice %214 {offsets = [0, 256], sizes = [8, 128], strides = [1, 1]} : vector<8x384xf32> to vector<8x128xf32>
    %232 = vector.extract_strided_slice %210 {offsets = [0, 256], sizes = [8, 128], strides = [1, 1]} : vector<8x384xf32> to vector<8x128xf32>
    %233 = vector.broadcast %9 : vector<1x128xf32> to vector<8x128xf32>
    %234 = arith.addf %232, %233 : vector<8x128xf32>
    %235 = arith.mulf %222, %234 : vector<8x128xf32>
    %236 = arith.addf %231, %235 : vector<8x128xf32>
    %237 = math.tanh %236 : vector<8x128xf32>
    %cst_55 = arith.constant 1.000000e+00 : f32
    %238 = vector.broadcast %cst_55 : f32 to vector<8x128xf32>
    %239 = arith.subf %238, %230 : vector<8x128xf32>
    %240 = arith.mulf %239, %237 : vector<8x128xf32>
    %241 = arith.mulf %230, %209 : vector<8x128xf32>
    %242 = arith.addf %240, %241 : vector<8x128xf32>
    %c7_i32 = arith.constant 7 : i32
    %cst_56 = arith.constant dense<0.000000e+00> : vector<8x384xf32>
    %243 = tpu.matmul %242, %8, %cst_56 {dimension_numbers = #tpu.dot_dimension_numbers<[1], [0], [0], [1], [0, 0, 1, 1], [], []>} : vector<8x128xf32>, vector<128x384xf32>, vector<8x384xf32> -> vector<8x384xf32>
    %c8_i32_57 = arith.constant 8 : i32
    %244 = arith.muli %c7_i32, %c8_i32_57 : i32
    %245 = tpu.assume_multiple %244, 8 : i32
    %246 = arith.index_cast %245 : i32 to index
    %c0_58 = arith.constant 0 : index
    %247 = vector.load %arg9[%246, %c0_58] : memref<64x384xf32, #tpu.memory_space<vmem>>, vector<8x384xf32>
    %248 = vector.extract_strided_slice %247 {offsets = [0, 0], sizes = [8, 128], strides = [1, 1]} : vector<8x384xf32> to vector<8x128xf32>
    %249 = vector.extract_strided_slice %243 {offsets = [0, 0], sizes = [8, 128], strides = [1, 1]} : vector<8x384xf32> to vector<8x128xf32>
    %250 = arith.addf %248, %249 : vector<8x128xf32>
    %251 = arith.negf %250 : vector<8x128xf32>
    %252 = math.exp %251 : vector<8x128xf32>
    %cst_59 = arith.constant 1.000000e+00 : f32
    %253 = vector.broadcast %cst_59 : f32 to vector<8x128xf32>
    %254 = arith.addf %253, %252 : vector<8x128xf32>
    %255 = arith.divf %253, %254 : vector<8x128xf32>
    %256 = vector.extract_strided_slice %247 {offsets = [0, 128], sizes = [8, 128], strides = [1, 1]} : vector<8x384xf32> to vector<8x128xf32>
    %257 = vector.extract_strided_slice %243 {offsets = [0, 128], sizes = [8, 128], strides = [1, 1]} : vector<8x384xf32> to vector<8x128xf32>
    %258 = arith.addf %256, %257 : vector<8x128xf32>
    %259 = arith.negf %258 : vector<8x128xf32>
    %260 = math.exp %259 : vector<8x128xf32>
    %cst_60 = arith.constant 1.000000e+00 : f32
    %261 = vector.broadcast %cst_60 : f32 to vector<8x128xf32>
    %262 = arith.addf %261, %260 : vector<8x128xf32>
    %263 = arith.divf %261, %262 : vector<8x128xf32>
    %264 = vector.extract_strided_slice %247 {offsets = [0, 256], sizes = [8, 128], strides = [1, 1]} : vector<8x384xf32> to vector<8x128xf32>
    %265 = vector.extract_strided_slice %243 {offsets = [0, 256], sizes = [8, 128], strides = [1, 1]} : vector<8x384xf32> to vector<8x128xf32>
    %266 = vector.broadcast %9 : vector<1x128xf32> to vector<8x128xf32>
    %267 = arith.addf %265, %266 : vector<8x128xf32>
    %268 = arith.mulf %255, %267 : vector<8x128xf32>
    %269 = arith.addf %264, %268 : vector<8x128xf32>
    %270 = math.tanh %269 : vector<8x128xf32>
    %cst_61 = arith.constant 1.000000e+00 : f32
    %271 = vector.broadcast %cst_61 : f32 to vector<8x128xf32>
    %272 = arith.subf %271, %263 : vector<8x128xf32>
    %273 = arith.mulf %272, %270 : vector<8x128xf32>
    %274 = arith.mulf %263, %242 : vector<8x128xf32>
    %275 = arith.addf %273, %274 : vector<8x128xf32>
    %c8_i32_62 = arith.constant 8 : i32
    %cst_63 = arith.constant dense<0.000000e+00> : vector<8x128xf32>
    %276 = tpu.matmul %275, %10, %cst_63 {dimension_numbers = #tpu.dot_dimension_numbers<[1], [0], [0], [1], [0, 0, 1, 1], [], []>} : vector<8x128xf32>, vector<128x128xf32>, vector<8x128xf32> -> vector<8x128xf32>
    %c0_64 = arith.constant 0 : index
    %c0_65 = arith.constant 0 : index
    %277 = vector.load %arg7[%c0_64, %c0_65] : memref<1x128xf32, #tpu.memory_space<vmem>>, vector<1x128xf32>
    %278 = vector.broadcast %277 : vector<1x128xf32> to vector<8x128xf32>
    %279 = arith.addf %276, %278 : vector<8x128xf32>
    %c0_66 = arith.constant 0 : index
    %c0_67 = arith.constant 0 : index
    %280 = vector.load %arg8[%c0_66, %c0_67] : memref<8x128xf32, #tpu.memory_space<vmem>>, vector<8x128xf32>
    tpu.vector_store %arg8[%c0_66, %c0_67], %279 {strides = array<i32>} : memref<8x128xf32, #tpu.memory_space<vmem>>, vector<8x128xf32>,
    return
  }
  func.func @transform_0(%arg0: i32) -> (i32, i32, i32) {
    %c0_i32 = arith.constant 0 : i32
    %c0_i32_0 = arith.constant 0 : i32
    %c0_i32_1 = arith.constant 0 : i32
    return %c0_i32, %arg0, %c0_i32_0 : i32, i32, i32
  }
  func.func @transform_1(%arg0: i32) -> (i32, i32) {
    %c0_i32 = arith.constant 0 : i32
    %c0_i32_0 = arith.constant 0 : i32
    %c0_i32_1 = arith.constant 0 : i32
    return %c0_i32, %c0_i32_0 : i32, i32
  }
  func.func @transform_2(%arg0: i32) -> (i32, i32) {
    %c0_i32 = arith.constant 0 : i32
    %c0_i32_0 = arith.constant 0 : i32
    %c0_i32_1 = arith.constant 0 : i32
    return %c0_i32, %c0_i32_0 : i32, i32
  }
  func.func @transform_3(%arg0: i32) -> (i32, i32) {
    %c0_i32 = arith.constant 0 : i32
    %c0_i32_0 = arith.constant 0 : i32
    %c0_i32_1 = arith.constant 0 : i32
    return %c0_i32, %c0_i32_0 : i32, i32
  }
  func.func @transform_4(%arg0: i32) -> (i32, i32) {
    %c0_i32 = arith.constant 0 : i32
    %c0_i32_0 = arith.constant 0 : i32
    %c0_i32_1 = arith.constant 0 : i32
    return %c0_i32, %c0_i32_0 : i32, i32
  }
  func.func @transform_5(%arg0: i32) -> (i32, i32) {
    %c0_i32 = arith.constant 0 : i32
    %c0_i32_0 = arith.constant 0 : i32
    %c0_i32_1 = arith.constant 0 : i32
    return %c0_i32, %c0_i32_0 : i32, i32
  }
  func.func @transform_6(%arg0: i32) -> (i32, i32) {
    %c0_i32 = arith.constant 0 : i32
    %c0_i32_0 = arith.constant 0 : i32
    %c0_i32_1 = arith.constant 0 : i32
    return %c0_i32, %c0_i32_0 : i32, i32
  }
  func.func @transform_7(%arg0: i32) -> (i32, i32) {
    %c0_i32 = arith.constant 0 : i32
    %c0_i32_0 = arith.constant 0 : i32
    return %arg0, %c0_i32 : i32, i32
  }
}

</mosaic_0001>

<llo_original>
// kernel: tpu_custom_call.1
$region0: #{tpu_custom_call.1}
  #allocation0 [shape = 'u32[]', space=smem, size = 0x4, offset = 0x4, fixed_abs, tag = 'smem constant byte address 0x4 - core index']
  #allocation1 [shape = 'u32[72,128]{1,0:T(1,128)}', space=vmem, size = 0x9000, scoped, tag = 'internal scratch']
  #allocation2 [shape = 'f32[64,384]{1,0:T(8,128)}', space=vmem, size = 0x18000, scoped, tag = 'scratch operand']
  %s0 = inlined_call_operand.hbm [shape: f32[8,8,64], index: 0, kind: input, shape index: {}]
  %s1 = inlined_call_operand.hbm [shape: f32[64,384], index: 1, kind: input, shape index: {}]
  %s2 = inlined_call_operand.hbm [shape: f32[128,384], index: 2, kind: input, shape index: {}]
  %s3 = inlined_call_operand.hbm [shape: f32[1,384], index: 3, kind: input, shape index: {}]
  %s4 = inlined_call_operand.vmem [shape: f32[1,128], index: 4, kind: input, shape index: {}]
  %s5 = inlined_call_operand.hbm [shape: f32[128,128], index: 5, kind: input, shape index: {}]
  %s6 = inlined_call_operand.vmem [shape: f32[1,128], index: 6, kind: input, shape index: {}]
  %s7 = inlined_call_operand.hbm [shape: f32[8,128], index: 7, kind: output, shape index: {}]
  %s8 = sld [smem:[#allocation0]]
  $region58: #{tpu_custom_call.1} parent=0
    _
  %s10 = ssub.s32 1, %s8
  %s11 = scalar_select 0, %s10, %s8
  $region1: #{tpu_custom_call.1} parent=0
    #allocation3 [shape = 'u8[32768]{0}', space=vmem, size = 0x8000, scoped, tag = 'input window, operand 0, single buffered']
    #allocation4 [shape = 's32[1]{0}', space=sflag, size = 0x4, scoped, tag = 'scoped memory for tpu_custom_call.1']
    #allocation5 [shape = 's32[1]{0}', space=sflag, size = 0x4, scoped, tag = 'scoped memory for tpu_custom_call.1']
    #allocation6 [shape = 'u8[98304]{0}', space=vmem, size = 0x18000, scoped, tag = 'input window, operand 1, single buffered']
    #allocation7 [shape = 's32[1]{0}', space=sflag, size = 0x4, scoped, tag = 'scoped memory for tpu_custom_call.1']
    #allocation8 [shape = 'u8[196608]{0}', space=vmem, size = 0x30000, scoped, tag = 'input window, operand 2, single buffered']
    #allocation9 [shape = 'u8[1536]{0}', space=vmem, size = 0x800, scoped, tag = 'input window, operand 3, single buffered']
    #allocation10 [shape = 's32[1]{0}', space=sflag, size = 0x4, scoped, tag = 'scoped memory for tpu_custom_call.1']
    #allocation11 [shape = 'u8[65536]{0}', space=vmem, size = 0x10000, scoped, tag = 'input window, operand 5, single buffered']
    #allocation12 [shape = 'u8[4096]{0}', space=vmem, size = 0x1000, scoped, tag = 'output window, operand 0, single buffered']
    %12 = vsyncpa [#allocation4], 0
    %13 = vsyncpa [#allocation7], 0
    %14 = vsyncpa [#allocation10], 0
    %15 = vsyncpa [#allocation5], 0
    // Predicated region
    $region2: #{tpu_custom_call.1} parent=1 // pred_check
      _
    $region3: #{tpu_custom_call.1} parent=1 // pred_check_branch
      %17 = sbr.rel (0) target = $region5
    $region4: #{tpu_custom_call.1} parent=1 // pred_region
      %19 = vsyncadd [#allocation4], 0
      %s20 = sshll.u32 %s0, 4
      %s21 = int_to_ptr.hbm [resolvable:$true] %s20
      %s22 = sshll.u32 [#allocation3], 4
      %s23 = int_to_ptr.vmem [resolvable:$true] %s22
      %28 = dma.hbm_to_vmem [thread:$0]  %s21, 1024, %s23, [#allocation4], 128, 128, 8
    $region5: #{tpu_custom_call.1} parent=1 // pred_fallthru
      _
    // Predicated region
    $region6: #{tpu_custom_call.1} parent=1 // pred_check
      _
    $region7: #{tpu_custom_call.1} parent=1 // pred_check_branch
      %30 = sbr.rel (0) target = $region9
    $region8: #{tpu_custom_call.1} parent=1 // pred_region
      %32 = vsyncadd [#allocation7], 0
      %s33 = sshll.u32 %s1, 4
      %s34 = int_to_ptr.hbm [resolvable:$true] %s33
      %s35 = sshll.u32 [#allocation6], 4
      %s36 = int_to_ptr.vmem [resolvable:$true] %s35
      %41 = dma.hbm_to_vmem [thread:$0]  %s34, 3072, %s36, [#allocation7], 384, 384, 24
    $region9: #{tpu_custom_call.1} parent=1 // pred_fallthru
      _
    // Predicated region
    $region10: #{tpu_custom_call.1} parent=1 // pred_check
      _
    $region11: #{tpu_custom_call.1} parent=1 // pred_check_branch
      %43 = sbr.rel (0) target = $region13
    $region12: #{tpu_custom_call.1} parent=1 // pred_region
      %45 = vsyncadd [#allocation7], 0
      %s46 = sshll.u32 %s2, 4
      %s47 = int_to_ptr.hbm [resolvable:$true] %s46
      %s48 = sshll.u32 [#allocation8], 4
      %s49 = int_to_ptr.vmem [resolvable:$true] %s48
      %54 = dma.hbm_to_vmem [thread:$0]  %s47, 6144, %s49, [#allocation7], 384, 384, 24
    $region13: #{tpu_custom_call.1} parent=1 // pred_fallthru
      _
    // Predicated region
    $region14: #{tpu_custom_call.1} parent=1 // pred_check
      _
    $region15: #{tpu_custom_call.1} parent=1 // pred_check_branch
      %56 = sbr.rel (0) target = $region17
    $region16: #{tpu_custom_call.1} parent=1 // pred_region
      %58 = vsyncadd [#allocation10], 0
      %s60 = sshll.u32 %s3, 4
      %s61 = int_to_ptr.hbm [resolvable:$true] %s60
      %s62 = sshll.u32 [#allocation9], 4
      %s63 = int_to_ptr.vmem [resolvable:$true] %s62
      %65 = dma.hbm_to_vmem [thread:$0]  %s61, 48, %s63, [#allocation10]
    $region17: #{tpu_custom_call.1} parent=1 // pred_fallthru
      _
    // Predicated region
    $region18: #{tpu_custom_call.1} parent=1 // pred_check
      _
    $region19: #{tpu_custom_call.1} parent=1 // pred_check_branch
      %67 = sbr.rel (0) target = $region21
    $region20: #{tpu_custom_call.1} parent=1 // pred_region
      _
    $region21: #{tpu_custom_call.1} parent=1 // pred_fallthru
      _
    // Predicated region
    $region22: #{tpu_custom_call.1} parent=1 // pred_check
      _
    $region23: #{tpu_custom_call.1} parent=1 // pred_check_branch
      %69 = sbr.rel (0) target = $region25
    $region24: #{tpu_custom_call.1} parent=1 // pred_region
      %71 = vsyncadd [#allocation10], 0
      %s72 = sshll.u32 %s5, 4
      %s73 = int_to_ptr.hbm [resolvable:$true] %s72
      %s74 = sshll.u32 [#allocation11], 4
      %s75 = int_to_ptr.vmem [resolvable:$true] %s74
      %80 = dma.hbm_to_vmem [thread:$0]  %s73, 2048, %s75, [#allocation10], 128, 128, 8
    $region25: #{tpu_custom_call.1} parent=1 // pred_fallthru
      _
    // Predicated region
    $region26: #{tpu_custom_call.1} parent=1 // pred_check
      _
    $region27: #{tpu_custom_call.1} parent=1 // pred_check_branch
      %82 = sbr.rel (0) target = $region29
    $region28: #{tpu_custom_call.1} parent=1 // pred_region
      _
    $region29: #{tpu_custom_call.1} parent=1 // pred_fallthru
      _
    // Predicated region
    $region30: #{tpu_custom_call.1} parent=1 // pred_check
      _
    $region31: #{tpu_custom_call.1} parent=1 // pred_check_branch
      %84 = sbr.rel (0) target = $region33
    $region32: #{tpu_custom_call.1} parent=1 // pred_region
      %86 = dma.done [#allocation4], 1024
    $region33: #{tpu_custom_call.1} parent=1 // pred_fallthru
      _
    // Predicated region
    $region34: #{tpu_custom_call.1} parent=1 // pred_check
      _
    $region35: #{tpu_custom_call.1} parent=1 // pred_check_branch
      %88 = sbr.rel (0) target = $region37
    $region36: #{tpu_custom_call.1} parent=1 // pred_region
      %90 = dma.done [#allocation7], 3072
    $region37: #{tpu_custom_call.1} parent=1 // pred_fallthru
      _
    // Predicated region
    $region38: #{tpu_custom_call.1} parent=1 // pred_check
      _
    $region39: #{tpu_custom_call.1} parent=1 // pred_check_branch
      %92 = sbr.rel (0) target = $region41
    $region40: #{tpu_custom_call.1} parent=1 // pred_region
      %94 = dma.done [#allocation7], 6144
    $region41: #{tpu_custom_call.1} parent=1 // pred_fallthru
      _
    // Predicated region
    $region42: #{tpu_custom_call.1} parent=1 // pred_check
      _
    $region43: #{tpu_custom_call.1} parent=1 // pred_check_branch
      %96 = sbr.rel (0) target = $region45
    $region44: #{tpu_custom_call.1} parent=1 // pred_region
      %98 = dma.done [#allocation10], 48
    $region45: #{tpu_custom_call.1} parent=1 // pred_fallthru
      _
    // Predicated region
    $region46: #{tpu_custom_call.1} parent=1 // pred_check
      _
    $region47: #{tpu_custom_call.1} parent=1 // pred_check_branch
      %100 = sbr.rel (0) target = $region49
    $region48: #{tpu_custom_call.1} parent=1 // pred_region
      %102 = dma.done [#allocation10], 2048
    $region49: #{tpu_custom_call.1} parent=1 // pred_fallthru
      _
    %v103 = vld [vmem:[#allocation3] sm:$0xff]
    %v104 = vld [vmem:[#allocation3 + $0x8] sm:$0xff]
    %v105 = vld [vmem:[#allocation3 + $0x10] sm:$0xff]
    %v106 = vld [vmem:[#allocation3 + $0x18] sm:$0xff]
    %v107 = vld [vmem:[#allocation3 + $0x20] sm:$0xff]
    %v108 = vld [vmem:[#allocation3 + $0x28] sm:$0xff]
    %v109 = vld [vmem:[#allocation3 + $0x30] sm:$0xff]
    %v110 = vld [vmem:[#allocation3 + $0x38] sm:$0xff]
    %v111 = vld [vmem:[#allocation6] sm:$0xff]
    %v112 = vld [vmem:[#allocation6 + $0x8] sm:$0xff]
    %v113 = vld [vmem:[#allocation6 + $0x10] sm:$0xff]
    %v114 = vld [vmem:[#allocation6 + $0x18] sm:$0xff]
    %v115 = vld [vmem:[#allocation6 + $0x20] sm:$0xff]
    %v116 = vld [vmem:[#allocation6 + $0x28] sm:$0xff]
    %v117 = vld [vmem:[#allocation6 + $0x30] sm:$0xff]
    %v118 = vld [vmem:[#allocation6 + $0x38] sm:$0xff]
    %v119 = vld [vmem:[#allocation6 + $0x40] sm:$0xff]
    %v120 = vld [vmem:[#allocation6 + $0x48] sm:$0xff]
    %v121 = vld [vmem:[#allocation6 + $0x50] sm:$0xff]
    %v122 = vld [vmem:[#allocation6 + $0x58] sm:$0xff]
    %v123 = vld [vmem:[#allocation6 + $0x60] sm:$0xff]
    %v124 = vld [vmem:[#allocation6 + $0x68] sm:$0xff]
    %v125 = vld [vmem:[#allocation6 + $0x70] sm:$0xff]
    %v126 = vld [vmem:[#allocation6 + $0x78] sm:$0xff]
    %v127 = vld [vmem:[#allocation6 + $0x80] sm:$0xff]
    %v128 = vld [vmem:[#allocation6 + $0x88] sm:$0xff]
    %v129 = vld [vmem:[#allocation6 + $0x90] sm:$0xff]
    %v130 = vld [vmem:[#allocation6 + $0x98] sm:$0xff]
    %v131 = vld [vmem:[#allocation6 + $0xa0] sm:$0xff]
    %v132 = vld [vmem:[#allocation6 + $0xa8] sm:$0xff]
    %v133 = vld [vmem:[#allocation6 + $0xb0] sm:$0xff]
    %v134 = vld [vmem:[#allocation6 + $0xb8] sm:$0xff]
    %v135 = vld [vmem:[#allocation9] sm:$0x7]
    %v137 = vperm.slane %v135, 0
    %v138 = vperm.slane %v135, 1
    %v139 = vperm.slane %v135, 2
    %vm143 = vcmask 523264
    %v145 = vsel %vm143, %v103, 0
    %v148 = vsel %vm143, %v104, 0
    %v151 = vsel %vm143, %v105, 0
    %v154 = vsel %vm143, %v106, 0
    %v157 = vsel %vm143, %v107, 0
    %v160 = vsel %vm143, %v108, 0
    %v163 = vsel %vm143, %v109, 0
    %v166 = vsel %vm143, %v110, 0
    %168 = vmatpush.msra.mxu0 0.0
    %169 = vmatpush.msra.mxu0 0.0
    %170 = vmatpush.msra.mxu0 0.0
    %171 = vmatpush.msra.mxu0 0.0
    %172 = vmatpush.msra.mxu0 0.0
    %173 = vmatpush.msra.mxu0 0.0
    %174 = vmatpush.msra.mxu0 0.0
    %175 = vmatpush.msra.mxu0 0.0
    %176 = vmatpush.msra.mxu0 %v132
    %177 = vmatpush.msra.mxu0 %v129
    %178 = vmatpush.msra.mxu0 %v126
    %179 = vmatpush.msra.mxu0 %v123
    %180 = vmatpush.msra.mxu0 %v120
    %181 = vmatpush.msra.mxu0 %v117
    %182 = vmatpush.msra.mxu0 %v114
    %183 = vmatpush.msra.mxu0 %v111
    %184 = vmatmul.f32.gmra.mxu0 %v145
    %v185 = vpop.f32.mrf.mxu0
    %v186 = vadd.f32 %v137, %v185
    %187 = vmatmul.f32.gmra.mxu0 %v148
    %v188 = vpop.f32.mrf.mxu0
    %v189 = vadd.f32 %v137, %v188
    %190 = vmatmul.f32.gmra.mxu0 %v151
    %v191 = vpop.f32.mrf.mxu0
    %v192 = vadd.f32 %v137, %v191
    %193 = vmatmul.f32.gmra.mxu0 %v154
    %v194 = vpop.f32.mrf.mxu0
    %v195 = vadd.f32 %v137, %v194
    %196 = vmatmul.f32.gmra.mxu0 %v157
    %v197 = vpop.f32.mrf.mxu0
    %v198 = vadd.f32 %v137, %v197
    %199 = vmatmul.f32.gmra.mxu0 %v160
    %v200 = vpop.f32.mrf.mxu0
    %v201 = vadd.f32 %v137, %v200
    %202 = vmatmul.f32.gmra.mxu0 %v163
    %v203 = vpop.f32.mrf.mxu0
    %v204 = vadd.f32 %v137, %v203
    %205 = vmatmul.f32.gmra.mxu0 %v166
    %v206 = vpop.f32.mrf.mxu0
    %v207 = vadd.f32 %v137, %v206
    %208 = vdwg.mxu0
    %209 = vmatpush.msra.mxu0 0.0
    %210 = vmatpush.msra.mxu0 0.0
    %211 = vmatpush.msra.mxu0 0.0
    %212 = vmatpush.msra.mxu0 0.0
    %213 = vmatpush.msra.mxu0 0.0
    %214 = vmatpush.msra.mxu0 0.0
    %215 = vmatpush.msra.mxu0 0.0
    %216 = vmatpush.msra.mxu0 0.0
    %217 = vmatpush.msra.mxu0 %v133
    %218 = vmatpush.msra.mxu0 %v130
    %219 = vmatpush.msra.mxu0 %v127
    %220 = vmatpush.msra.mxu0 %v124
    %221 = vmatpush.msra.mxu0 %v121
    %222 = vmatpush.msra.mxu0 %v118
    %223 = vmatpush.msra.mxu0 %v115
    %224 = vmatpush.msra.mxu0 %v112
    %225 = vmatmul.f32.gmra.mxu0 %v145
    %v226 = vpop.f32.mrf.mxu0
    %v227 = vadd.f32 %v138, %v226
    %228 = vmatmul.f32.gmra.mxu0 %v148
    %v229 = vpop.f32.mrf.mxu0
    %v230 = vadd.f32 %v138, %v229
    %231 = vmatmul.f32.gmra.mxu0 %v151
    %v232 = vpop.f32.mrf.mxu0
    %v233 = vadd.f32 %v138, %v232
    %234 = vmatmul.f32.gmra.mxu0 %v154
    %v235 = vpop.f32.mrf.mxu0
    %v236 = vadd.f32 %v138, %v235
    %237 = vmatmul.f32.gmra.mxu0 %v157
    %v238 = vpop.f32.mrf.mxu0
    %v239 = vadd.f32 %v138, %v238
    %240 = vmatmul.f32.gmra.mxu0 %v160
    %v241 = vpop.f32.mrf.mxu0
    %v242 = vadd.f32 %v138, %v241
    %243 = vmatmul.f32.gmra.mxu0 %v163
    %v244 = vpop.f32.mrf.mxu0
    %v245 = vadd.f32 %v138, %v244
    %246 = vmatmul.f32.gmra.mxu0 %v166
    %v247 = vpop.f32.mrf.mxu0
    %v248 = vadd.f32 %v138, %v247
    %249 = vdwg.mxu0
    %250 = vmatpush.msra.mxu0 0.0
    %251 = vmatpush.msra.mxu0 0.0
    %252 = vmatpush.msra.mxu0 0.0
    %253 = vmatpush.msra.mxu0 0.0
    %254 = vmatpush.msra.mxu0 0.0
    %255 = vmatpush.msra.mxu0 0.0
    %256 = vmatpush.msra.mxu0 0.0
    %257 = vmatpush.msra.mxu0 0.0
    %258 = vmatpush.msra.mxu0 %v134
    %259 = vmatpush.msra.mxu0 %v131
    %260 = vmatpush.msra.mxu0 %v128
    %261 = vmatpush.msra.mxu0 %v125
    %262 = vmatpush.msra.mxu0 %v122
    %263 = vmatpush.msra.mxu0 %v119
    %264 = vmatpush.msra.mxu0 %v116
    %265 = vmatpush.msra.mxu0 %v113
    %266 = vmatmul.f32.gmra.mxu0 %v145
    %v267 = vpop.f32.mrf.mxu0
    %v268 = vadd.f32 %v139, %v267
    %269 = vmatmul.f32.gmra.mxu0 %v148
    %v270 = vpop.f32.mrf.mxu0
    %v271 = vadd.f32 %v139, %v270
    %272 = vmatmul.f32.gmra.mxu0 %v151
    %v273 = vpop.f32.mrf.mxu0
    %v274 = vadd.f32 %v139, %v273
    %275 = vmatmul.f32.gmra.mxu0 %v154
    %v276 = vpop.f32.mrf.mxu0
    %v277 = vadd.f32 %v139, %v276
    %278 = vmatmul.f32.gmra.mxu0 %v157
    %v279 = vpop.f32.mrf.mxu0
    %v280 = vadd.f32 %v139, %v279
    %281 = vmatmul.f32.gmra.mxu0 %v160
    %v282 = vpop.f32.mrf.mxu0
    %v283 = vadd.f32 %v139, %v282
    %284 = vmatmul.f32.gmra.mxu0 %v163
    %v285 = vpop.f32.mrf.mxu0
    %v286 = vadd.f32 %v139, %v285
    %287 = vmatmul.f32.gmra.mxu0 %v166
    %v288 = vpop.f32.mrf.mxu0
    %v289 = vadd.f32 %v139, %v288
    %290 = vdwg.mxu0
    %291 = vst [vmem:[#allocation2] sm:$0xff] %v186
    %292 = vst [vmem:[#allocation2 + $0x8] sm:$0xff] %v227
    %293 = vst [vmem:[#allocation2 + $0x10] sm:$0xff] %v268
    %294 = vst [vmem:[#allocation2 + $0x18] sm:$0xff] %v189
    %295 = vst [vmem:[#allocation2 + $0x20] sm:$0xff] %v230
    %296 = vst [vmem:[#allocation2 + $0x28] sm:$0xff] %v271
    %297 = vst [vmem:[#allocation2 + $0x30] sm:$0xff] %v192
    %298 = vst [vmem:[#allocation2 + $0x38] sm:$0xff] %v233
    %299 = vst [vmem:[#allocation2 + $0x40] sm:$0xff] %v274
    %300 = vst [vmem:[#allocation2 + $0x48] sm:$0xff] %v195
    %301 = vst [vmem:[#allocation2 + $0x50] sm:$0xff] %v236
    %302 = vst [vmem:[#allocation2 + $0x58] sm:$0xff] %v277
    %303 = vst [vmem:[#allocation2 + $0x60] sm:$0xff] %v198
    %304 = vst [vmem:[#allocation2 + $0x68] sm:$0xff] %v239
    %305 = vst [vmem:[#allocation2 + $0x70] sm:$0xff] %v280
    %306 = vst [vmem:[#allocation2 + $0x78] sm:$0xff] %v201
    %307 = vst [vmem:[#allocation2 + $0x80] sm:$0xff] %v242
    %308 = vst [vmem:[#allocation2 + $0x88] sm:$0xff] %v283
    %309 = vst [vmem:[#allocation2 + $0x90] sm:$0xff] %v204
    %310 = vst [vmem:[#allocation2 + $0x98] sm:$0xff] %v245
    %311 = vst [vmem:[#allocation2 + $0xa0] sm:$0xff] %v286
    %312 = vst [vmem:[#allocation2 + $0xa8] sm:$0xff] %v207
    %313 = vst [vmem:[#allocation2 + $0xb0] sm:$0xff] %v248
    %314 = vst [vmem:[#allocation2 + $0xb8] sm:$0xff] %v289
    %v315 = vld [vmem:[#allocation8] sm:$0xff]
    %v316 = vld [vmem:[#allocation8 + $0x8] sm:$0xff]
    %v317 = vld [vmem:[#allocation8 + $0x10] sm:$0xff]
    %v318 = vld [vmem:[#allocation8 + $0x18] sm:$0xff]
    %v319 = vld [vmem:[#allocation8 + $0x20] sm:$0xff]
    %v320 = vld [vmem:[#allocation8 + $0x28] sm:$0xff]
    %v321 = vld [vmem:[#allocation8 + $0x30] sm:$0xff]
    %v322 = vld [vmem:[#allocation8 + $0x38] sm:$0xff]
    %v323 = vld [vmem:[#allocation8 + $0x40] sm:$0xff]
    %v324 = vld [vmem:[#allocation8 + $0x48] sm:$0xff]
    %v325 = vld [vmem:[#allocation8 + $0x50] sm:$0xff]
    %v326 = vld [vmem:[#allocation8 + $0x58] sm:$0xff]
    %v327 = vld [vmem:[#allocation8 + $0x60] sm:$0xff]
    %v328 = vld [vmem:[#allocation8 + $0x68] sm:$0xff]
    %v329 = vld [vmem:[#allocation8 + $0x70] sm:$0xff]
    %v330 = vld [vmem:[#allocation8 + $0x78] sm:$0xff]
    %v331 = vld [vmem:[#allocation8 + $0x80] sm:$0xff]
    %v332 = vld [vmem:[#allocation8 + $0x88] sm:$0xff]
    %v333 = vld [vmem:[#allocation8 + $0x90] sm:$0xff]
    %v334 = vld [vmem:[#allocation8 + $0x98] sm:$0xff]
    %v335 = vld [vmem:[#allocation8 + $0xa0] sm:$0xff]
    %v336 = vld [vmem:[#allocation8 + $0xa8] sm:$0xff]
    %v337 = vld [vmem:[#allocation8 + $0xb0] sm:$0xff]
    %v338 = vld [vmem:[#allocation8 + $0xb8] sm:$0xff]
    %v339 = vld [vmem:[#allocation8 + $0xc0] sm:$0xff]
    %v340 = vld [vmem:[#allocation8 + $0xc8] sm:$0xff]
    %v341 = vld [vmem:[#allocation8 + $0xd0] sm:$0xff]
    %v342 = vld [vmem:[#allocation8 + $0xd8] sm:$0xff]
    %v343 = vld [vmem:[#allocation8 + $0xe0] sm:$0xff]
    %v344 = vld [vmem:[#allocation8 + $0xe8] sm:$0xff]
    %v345 = vld [vmem:[#allocation8 + $0xf0] sm:$0xff]
    %v346 = vld [vmem:[#allocation8 + $0xf8] sm:$0xff]
    %v347 = vld [vmem:[#allocation8 + $0x100] sm:$0xff]
    %v348 = vld [vmem:[#allocation8 + $0x108] sm:$0xff]
    %v349 = vld [vmem:[#allocation8 + $0x110] sm:$0xff]
    %v350 = vld [vmem:[#allocation8 + $0x118] sm:$0xff]
    %v351 = vld [vmem:[#allocation8 + $0x120] sm:$0xff]
    %v352 = vld [vmem:[#allocation8 + $0x128] sm:$0xff]
    %v353 = vld [vmem:[#allocation8 + $0x130] sm:$0xff]
    %v354 = vld [vmem:[#allocation8 + $0x138] sm:$0xff]
    %v355 = vld [vmem:[#allocation8 + $0x140] sm:$0xff]
    %v356 = vld [vmem:[#allocation8 + $0x148] sm:$0xff]
    %v357 = vld [vmem:[#allocation8 + $0x150] sm:$0xff]
    %v358 = vld [vmem:[#allocation8 + $0x158] sm:$0xff]
    %v359 = vld [vmem:[#allocation8 + $0x160] sm:$0xff]
    %v360 = vld [vmem:[#allocation8 + $0x168] sm:$0xff]
    %v361 = vld [vmem:[#allocation8 + $0x170] sm:$0xff]
    %v362 = vld [vmem:[#allocation8 + $0x178] sm:$0xff]
    %v363 = vld [vmem:[%s4] sm:$0x1]
    %v364 = vld [vmem:[#allocation11] sm:$0xff]
    %v365 = vld [vmem:[#allocation11 + $0x8] sm:$0xff]
    %v366 = vld [vmem:[#allocation11 + $0x10] sm:$0xff]
    %v367 = vld [vmem:[#allocation11 + $0x18] sm:$0xff]
    %v368 = vld [vmem:[#allocation11 + $0x20] sm:$0xff]
    %v369 = vld [vmem:[#allocation11 + $0x28] sm:$0xff]
    %v370 = vld [vmem:[#allocation11 + $0x30] sm:$0xff]
    %v371 = vld [vmem:[#allocation11 + $0x38] sm:$0xff]
    %v372 = vld [vmem:[#allocation11 + $0x40] sm:$0xff]
    %v373 = vld [vmem:[#allocation11 + $0x48] sm:$0xff]
    %v374 = vld [vmem:[#allocation11 + $0x50] sm:$0xff]
    %v375 = vld [vmem:[#allocation11 + $0x58] sm:$0xff]
    %v376 = vld [vmem:[#allocation11 + $0x60] sm:$0xff]
    %v377 = vld [vmem:[#allocation11 + $0x68] sm:$0xff]
    %v378 = vld [vmem:[#allocation11 + $0x70] sm:$0xff]
    %v379 = vld [vmem:[#allocation11 + $0x78] sm:$0xff]
    %380 = vmatpush.msra.mxu0 %v360
    %381 = vmatpush.msra.mxu0 %v357
    %382 = vmatpush.msra.mxu0 %v354
    %383 = vmatpush.msra.mxu0 %v351
    %384 = vmatpush.msra.mxu0 %v348
    %385 = vmatpush.msra.mxu0 %v345
    %386 = vmatpush.msra.mxu0 %v342
    %387 = vmatpush.msra.mxu0 %v339
    %388 = vmatpush.msra.mxu0 %v336
    %389 = vmatpush.msra.mxu0 %v333
    %390 = vmatpush.msra.mxu0 %v330
    %391 = vmatpush.msra.mxu0 %v327
    %392 = vmatpush.msra.mxu0 %v324
    %393 = vmatpush.msra.mxu0 %v321
    %394 = vmatpush.msra.mxu0 %v318
    %395 = vmatpush.msra.mxu0 %v315
    %396 = vmatmul.f32.gmra.mxu0 0.0
    %v397 = vpop.f32.mrf.mxu0
    %v398 = vadd.f32 0.0, %v397
    %399 = vdwg.mxu0
    %400 = vmatpush.msra.mxu0 %v361
    %401 = vmatpush.msra.mxu0 %v358
    %402 = vmatpush.msra.mxu0 %v355
    %403 = vmatpush.msra.mxu0 %v352
    %404 = vmatpush.msra.mxu0 %v349
    %405 = vmatpush.msra.mxu0 %v346
    %406 = vmatpush.msra.mxu0 %v343
    %407 = vmatpush.msra.mxu0 %v340
    %408 = vmatpush.msra.mxu0 %v337
    %409 = vmatpush.msra.mxu0 %v334
    %410 = vmatpush.msra.mxu0 %v331
    %411 = vmatpush.msra.mxu0 %v328
    %412 = vmatpush.msra.mxu0 %v325
    %413 = vmatpush.msra.mxu0 %v322
    %414 = vmatpush.msra.mxu0 %v319
    %415 = vmatpush.msra.mxu0 %v316
    %416 = vmatmul.f32.gmra.mxu0 0.0
    %v417 = vpop.f32.mrf.mxu0
    %v418 = vadd.f32 0.0, %v417
    %419 = vdwg.mxu0
    %420 = vmatpush.msra.mxu0 %v362
    %421 = vmatpush.msra.mxu0 %v359
    %422 = vmatpush.msra.mxu0 %v356
    %423 = vmatpush.msra.mxu0 %v353
    %424 = vmatpush.msra.mxu0 %v350
    %425 = vmatpush.msra.mxu0 %v347
    %426 = vmatpush.msra.mxu0 %v344
    %427 = vmatpush.msra.mxu0 %v341
    %428 = vmatpush.msra.mxu0 %v338
    %429 = vmatpush.msra.mxu0 %v335
    %430 = vmatpush.msra.mxu0 %v332
    %431 = vmatpush.msra.mxu0 %v329
    %432 = vmatpush.msra.mxu0 %v326
    %433 = vmatpush.msra.mxu0 %v323
    %434 = vmatpush.msra.mxu0 %v320
    %435 = vmatpush.msra.mxu0 %v317
    %436 = vmatmul.f32.gmra.mxu0 0.0
    %v437 = vpop.f32.mrf.mxu0
    %v438 = vadd.f32 0.0, %v437
    %439 = vdwg.mxu0
    %s440 = smul.u32 0, 3
    %s441 = smul.addr %s440, 8
    %s442 = scalar_lea.vmem [#allocation2], %s441
    %v443 = vld [vmem:[%s442] sm:$0xff]
    %v444 = vld [vmem:[%s442 + $0x8] sm:$0xff]
    %v445 = vld [vmem:[%s442 + $0x10] sm:$0xff]
    %v446 = vadd.f32 %v443, %v398
    %v447 = vxor.u32 %v446, 2147483648
    %v448 = vmul.f32 %v447, 1.442695
    %v449 = vpow.pop %v448
    %v450 = vadd.f32 %v449, 1.0
    %v451 = vrcp.pop %v450
    %v452 = vmul.f32 %v450, %v451
    %v453 = vsub.f32 1.0, %v452
    %v454 = vmul.f32 %v451, %v453
    %v455 = vadd.f32 %v451, %v454
    %vm456 = vweird.f32 %v450
    %vm457 = vweird.f32 %v451
    %vm458 = vmor %vm456, %vm457
    %v459 = vsel %vm458, %v451, %v455
    %v460 = vand.u32 2147483647, %v450
    %vm461 = vcmp.eq.f32.partialorder %v460, 8.507059e+37
    %v462 = vand.u32 %v450, 2147483648
    %v463 = vor.u32 1.1754944e-38, %v462
    %v464 = vsel %vm461, %v463, %v459
    %v465 = vmul.f32 1.0, %v464
    %v466 = vadd.f32 %v444, %v418
    %v467 = vxor.u32 %v466, 2147483648
    %v468 = vmul.f32 %v467, 1.442695
    %v469 = vpow.pop %v468
    %v470 = vadd.f32 %v469, 1.0
    %v471 = vrcp.pop %v470
    %v472 = vmul.f32 %v470, %v471
    %v473 = vsub.f32 1.0, %v472
    %v474 = vmul.f32 %v471, %v473
    %v475 = vadd.f32 %v471, %v474
    %vm476 = vweird.f32 %v470
    %vm477 = vweird.f32 %v471
    %vm478 = vmor %vm476, %vm477
    %v479 = vsel %vm478, %v471, %v475
    %v480 = vand.u32 2147483647, %v470
    %vm481 = vcmp.eq.f32.partialorder %v480, 8.507059e+37
    %v482 = vand.u32 %v470, 2147483648
    %v483 = vor.u32 1.1754944e-38, %v482
    %v484 = vsel %vm481, %v483, %v479
    %v485 = vmul.f32 1.0, %v484
    %v487 = vperm.slane %v363, 0
    %v489 = vadd.f32 %v438, %v487
    %v490 = vmul.f32 %v465, %v489
    %v491 = vadd.f32 %v445, %v490
    %v492 = vtanh.pop %v491
    %v493 = vsub.f32 1.0, %v485
    %v494 = vmul.f32 %v493, %v492
    %v495 = vmul.f32 %v485, 0.0
    %v496 = vadd.f32 %v494, %v495
    %497 = vmatpush.msra.mxu0 %v360
    %498 = vmatpush.msra.mxu0 %v357
    %499 = vmatpush.msra.mxu0 %v354
    %500 = vmatpush.msra.mxu0 %v351
    %501 = vmatpush.msra.mxu0 %v348
    %502 = vmatpush.msra.mxu0 %v345
    %503 = vmatpush.msra.mxu0 %v342
    %504 = vmatpush.msra.mxu0 %v339
    %505 = vmatpush.msra.mxu0 %v336
    %506 = vmatpush.msra.mxu0 %v333
    %507 = vmatpush.msra.mxu0 %v330
    %508 = vmatpush.msra.mxu0 %v327
    %509 = vmatpush.msra.mxu0 %v324
    %510 = vmatpush.msra.mxu0 %v321
    %511 = vmatpush.msra.mxu0 %v318
    %512 = vmatpush.msra.mxu0 %v315
    %513 = vmatmul.f32.gmra.mxu0 %v496
    %v514 = vpop.f32.mrf.mxu0
    %v515 = vadd.f32 0.0, %v514
    %516 = vdwg.mxu0
    %517 = vmatpush.msra.mxu0 %v361
    %518 = vmatpush.msra.mxu0 %v358
    %519 = vmatpush.msra.mxu0 %v355
    %520 = vmatpush.msra.mxu0 %v352
    %521 = vmatpush.msra.mxu0 %v349
    %522 = vmatpush.msra.mxu0 %v346
    %523 = vmatpush.msra.mxu0 %v343
    %524 = vmatpush.msra.mxu0 %v340
    %525 = vmatpush.msra.mxu0 %v337
    %526 = vmatpush.msra.mxu0 %v334
    %527 = vmatpush.msra.mxu0 %v331
    %528 = vmatpush.msra.mxu0 %v328
    %529 = vmatpush.msra.mxu0 %v325
    %530 = vmatpush.msra.mxu0 %v322
    %531 = vmatpush.msra.mxu0 %v319
    %532 = vmatpush.msra.mxu0 %v316
    %533 = vmatmul.f32.gmra.mxu0 %v496
    %v534 = vpop.f32.mrf.mxu0
    %v535 = vadd.f32 0.0, %v534
    %536 = vdwg.mxu0
    %537 = vmatpush.msra.mxu0 %v362
    %538 = vmatpush.msra.mxu0 %v359
    %539 = vmatpush.msra.mxu0 %v356
    %540 = vmatpush.msra.mxu0 %v353
    %541 = vmatpush.msra.mxu0 %v350
    %542 = vmatpush.msra.mxu0 %v347
    %543 = vmatpush.msra.mxu0 %v344
    %544 = vmatpush.msra.mxu0 %v341
    %545 = vmatpush.msra.mxu0 %v338
    %546 = vmatpush.msra.mxu0 %v335
    %547 = vmatpush.msra.mxu0 %v332
    %548 = vmatpush.msra.mxu0 %v329
    %549 = vmatpush.msra.mxu0 %v326
    %550 = vmatpush.msra.mxu0 %v323
    %551 = vmatpush.msra.mxu0 %v320
    %552 = vmatpush.msra.mxu0 %v317
    %553 = vmatmul.f32.gmra.mxu0 %v496
    %v554 = vpop.f32.mrf.mxu0
    %v555 = vadd.f32 0.0, %v554
    %556 = vdwg.mxu0
    %s557 = smul.u32 1, 3
    %s558 = smul.addr %s557, 8
    %s559 = scalar_lea.vmem [#allocation2], %s558
    %v560 = vld [vmem:[%s559] sm:$0xff]
    %v561 = vld [vmem:[%s559 + $0x8] sm:$0xff]
    %v562 = vld [vmem:[%s559 + $0x10] sm:$0xff]
    %v563 = vadd.f32 %v560, %v515
    %v564 = vxor.u32 %v563, 2147483648
    %v565 = vmul.f32 %v564, 1.442695
    %v566 = vpow.pop %v565
    %v567 = vadd.f32 %v566, 1.0
    %v568 = vrcp.pop %v567
    %v569 = vmul.f32 %v567, %v568
    %v570 = vsub.f32 1.0, %v569
    %v571 = vmul.f32 %v568, %v570
    %v572 = vadd.f32 %v568, %v571
    %vm573 = vweird.f32 %v567
    %vm574 = vweird.f32 %v568
    %vm575 = vmor %vm573, %vm574
    %v576 = vsel %vm575, %v568, %v572
    %v577 = vand.u32 2147483647, %v567
    %vm578 = vcmp.eq.f32.partialorder %v577, 8.507059e+37
    %v579 = vand.u32 %v567, 2147483648
    %v580 = vor.u32 1.1754944e-38, %v579
    %v581 = vsel %vm578, %v580, %v576
    %v582 = vmul.f32 1.0, %v581
    %v583 = vadd.f32 %v561, %v535
    %v584 = vxor.u32 %v583, 2147483648
    %v585 = vmul.f32 %v584, 1.442695
    %v586 = vpow.pop %v585
    %v587 = vadd.f32 %v586, 1.0
    %v588 = vrcp.pop %v587
    %v589 = vmul.f32 %v587, %v588
    %v590 = vsub.f32 1.0, %v589
    %v591 = vmul.f32 %v588, %v590
    %v592 = vadd.f32 %v588, %v591
    %vm593 = vweird.f32 %v587
    %vm594 = vweird.f32 %v588
    %vm595 = vmor %vm593, %vm594
    %v596 = vsel %vm595, %v588, %v592
    %v597 = vand.u32 2147483647, %v587
    %vm598 = vcmp.eq.f32.partialorder %v597, 8.507059e+37
    %v599 = vand.u32 %v587, 2147483648
    %v600 = vor.u32 1.1754944e-38, %v599
    %v601 = vsel %vm598, %v600, %v596
    %v602 = vmul.f32 1.0, %v601
    %v603 = vadd.f32 %v555, %v487
    %v604 = vmul.f32 %v582, %v603
    %v605 = vadd.f32 %v562, %v604
    %v606 = vtanh.pop %v605
    %v607 = vsub.f32 1.0, %v602
    %v608 = vmul.f32 %v607, %v606
    %v609 = vmul.f32 %v602, %v496
    %v610 = vadd.f32 %v608, %v609
    %611 = vmatpush.msra.mxu0 %v360
    %612 = vmatpush.msra.mxu0 %v357
    %613 = vmatpush.msra.mxu0 %v354
    %614 = vmatpush.msra.mxu0 %v351
    %615 = vmatpush.msra.mxu0 %v348
    %616 = vmatpush.msra.mxu0 %v345
    %617 = vmatpush.msra.mxu0 %v342
    %618 = vmatpush.msra.mxu0 %v339
    %619 = vmatpush.msra.mxu0 %v336
    %620 = vmatpush.msra.mxu0 %v333
    %621 = vmatpush.msra.mxu0 %v330
    %622 = vmatpush.msra.mxu0 %v327
    %623 = vmatpush.msra.mxu0 %v324
    %624 = vmatpush.msra.mxu0 %v321
    %625 = vmatpush.msra.mxu0 %v318
    %626 = vmatpush.msra.mxu0 %v315
    %627 = vmatmul.f32.gmra.mxu0 %v610
    %v628 = vpop.f32.mrf.mxu0
    %v629 = vadd.f32 0.0, %v628
    %630 = vdwg.mxu0
    %631 = vmatpush.msra.mxu0 %v361
    %632 = vmatpush.msra.mxu0 %v358
    %633 = vmatpush.msra.mxu0 %v355
    %634 = vmatpush.msra.mxu0 %v352
    %635 = vmatpush.msra.mxu0 %v349
    %636 = vmatpush.msra.mxu0 %v346
    %637 = vmatpush.msra.mxu0 %v343
    %638 = vmatpush.msra.mxu0 %v340
    %639 = vmatpush.msra.mxu0 %v337
    %640 = vmatpush.msra.mxu0 %v334
    %641 = vmatpush.msra.mxu0 %v331
    %642 = vmatpush.msra.mxu0 %v328
    %643 = vmatpush.msra.mxu0 %v325
    %644 = vmatpush.msra.mxu0 %v322
    %645 = vmatpush.msra.mxu0 %v319
    %646 = vmatpush.msra.mxu0 %v316
    %647 = vmatmul.f32.gmra.mxu0 %v610
    %v648 = vpop.f32.mrf.mxu0
    %v649 = vadd.f32 0.0, %v648
    %650 = vdwg.mxu0
    %651 = vmatpush.msra.mxu0 %v362
    %652 = vmatpush.msra.mxu0 %v359
    %653 = vmatpush.msra.mxu0 %v356
    %654 = vmatpush.msra.mxu0 %v353
    %655 = vmatpush.msra.mxu0 %v350
    %656 = vmatpush.msra.mxu0 %v347
    %657 = vmatpush.msra.mxu0 %v344
    %658 = vmatpush.msra.mxu0 %v341
    %659 = vmatpush.msra.mxu0 %v338
    %660 = vmatpush.msra.mxu0 %v335
    %661 = vmatpush.msra.mxu0 %v332
    %662 = vmatpush.msra.mxu0 %v329
    %663 = vmatpush.msra.mxu0 %v326
    %664 = vmatpush.msra.mxu0 %v323
    %665 = vmatpush.msra.mxu0 %v320
    %666 = vmatpush.msra.mxu0 %v317
    %667 = vmatmul.f32.gmra.mxu0 %v610
    %v668 = vpop.f32.mrf.mxu0
    %v669 = vadd.f32 0.0, %v668
    %670 = vdwg.mxu0
    %s671 = smul.u32 2, 3
    %s672 = smul.addr %s671, 8
    %s673 = scalar_lea.vmem [#allocation2], %s672
    %v674 = vld [vmem:[%s673] sm:$0xff]
    %v675 = vld [vmem:[%s673 + $0x8] sm:$0xff]
    %v676 = vld [vmem:[%s673 + $0x10] sm:$0xff]
    %v677 = vadd.f32 %v674, %v629
    %v678 = vxor.u32 %v677, 2147483648
    %v679 = vmul.f32 %v678, 1.442695
    %v680 = vpow.pop %v679
    %v681 = vadd.f32 %v680, 1.0
    %v682 = vrcp.pop %v681
    %v683 = vmul.f32 %v681, %v682
    %v684 = vsub.f32 1.0, %v683
    %v685 = vmul.f32 %v682, %v684
    %v686 = vadd.f32 %v682, %v685
    %vm687 = vweird.f32 %v681
    %vm688 = vweird.f32 %v682
    %vm689 = vmor %vm687, %vm688
    %v690 = vsel %vm689, %v682, %v686
    %v691 = vand.u32 2147483647, %v681
    %vm692 = vcmp.eq.f32.partialorder %v691, 8.507059e+37
    %v693 = vand.u32 %v681, 2147483648
    %v694 = vor.u32 1.1754944e-38, %v693
    %v695 = vsel %vm692, %v694, %v690
    %v696 = vmul.f32 1.0, %v695
    %v697 = vadd.f32 %v675, %v649
    %v698 = vxor.u32 %v697, 2147483648
    %v699 = vmul.f32 %v698, 1.442695
    %v700 = vpow.pop %v699
    %v701 = vadd.f32 %v700, 1.0
    %v702 = vrcp.pop %v701
    %v703 = vmul.f32 %v701, %v702
    %v704 = vsub.f32 1.0, %v703
    %v705 = vmul.f32 %v702, %v704
    %v706 = vadd.f32 %v702, %v705
    %vm707 = vweird.f32 %v701
    %vm708 = vweird.f32 %v702
    %vm709 = vmor %vm707, %vm708
    %v710 = vsel %vm709, %v702, %v706
    %v711 = vand.u32 2147483647, %v701
    %vm712 = vcmp.eq.f32.partialorder %v711, 8.507059e+37
    %v713 = vand.u32 %v701, 2147483648
    %v714 = vor.u32 1.1754944e-38, %v713
    %v715 = vsel %vm712, %v714, %v710
    %v716 = vmul.f32 1.0, %v715
    %v717 = vadd.f32 %v669, %v487
    %v718 = vmul.f32 %v696, %v717
    %v719 = vadd.f32 %v676, %v718
    %v720 = vtanh.pop %v719
    %v721 = vsub.f32 1.0, %v716
    %v722 = vmul.f32 %v721, %v720
    %v723 = vmul.f32 %v716, %v610
    %v724 = vadd.f32 %v722, %v723
    %725 = vmatpush.msra.mxu0 %v360
    %726 = vmatpush.msra.mxu0 %v357
    %727 = vmatpush.msra.mxu0 %v354
    %728 = vmatpush.msra.mxu0 %v351
    %729 = vmatpush.msra.mxu0 %v348
    %730 = vmatpush.msra.mxu0 %v345
    %731 = vmatpush.msra.mxu0 %v342
    %732 = vmatpush.msra.mxu0 %v339
    %733 = vmatpush.msra.mxu0 %v336
    %734 = vmatpush.msra.mxu0 %v333
    %735 = vmatpush.msra.mxu0 %v330
    %736 = vmatpush.msra.mxu0 %v327
    %737 = vmatpush.msra.mxu0 %v324
    %738 = vmatpush.msra.mxu0 %v321
    %739 = vmatpush.msra.mxu0 %v318
    %740 = vmatpush.msra.mxu0 %v315
    %741 = vmatmul.f32.gmra.mxu0 %v724
    %v742 = vpop.f32.mrf.mxu0
    %v743 = vadd.f32 0.0, %v742
    %744 = vdwg.mxu0
    %745 = vmatpush.msra.mxu0 %v361
    %746 = vmatpush.msra.mxu0 %v358
    %747 = vmatpush.msra.mxu0 %v355
    %748 = vmatpush.msra.mxu0 %v352
    %749 = vmatpush.msra.mxu0 %v349
    %750 = vmatpush.msra.mxu0 %v346
    %751 = vmatpush.msra.mxu0 %v343
    %752 = vmatpush.msra.mxu0 %v340
    %753 = vmatpush.msra.mxu0 %v337
    %754 = vmatpush.msra.mxu0 %v334
    %755 = vmatpush.msra.mxu0 %v331
    %756 = vmatpush.msra.mxu0 %v328
    %757 = vmatpush.msra.mxu0 %v325
    %758 = vmatpush.msra.mxu0 %v322
    %759 = vmatpush.msra.mxu0 %v319
    %760 = vmatpush.msra.mxu0 %v316
    %761 = vmatmul.f32.gmra.mxu0 %v724
    %v762 = vpop.f32.mrf.mxu0
    %v763 = vadd.f32 0.0, %v762
    %764 = vdwg.mxu0
    %765 = vmatpush.msra.mxu0 %v362
    %766 = vmatpush.msra.mxu0 %v359
    %767 = vmatpush.msra.mxu0 %v356
    %768 = vmatpush.msra.mxu0 %v353
    %769 = vmatpush.msra.mxu0 %v350
    %770 = vmatpush.msra.mxu0 %v347
    %771 = vmatpush.msra.mxu0 %v344
    %772 = vmatpush.msra.mxu0 %v341
    %773 = vmatpush.msra.mxu0 %v338
    %774 = vmatpush.msra.mxu0 %v335
    %775 = vmatpush.msra.mxu0 %v332
    %776 = vmatpush.msra.mxu0 %v329
    %777 = vmatpush.msra.mxu0 %v326
    %778 = vmatpush.msra.mxu0 %v323
    %779 = vmatpush.msra.mxu0 %v320
    %780 = vmatpush.msra.mxu0 %v317
    %781 = vmatmul.f32.gmra.mxu0 %v724
    %v782 = vpop.f32.mrf.mxu0
    %v783 = vadd.f32 0.0, %v782
    %784 = vdwg.mxu0
    %s785 = smul.u32 3, 3
    %s786 = smul.addr %s785, 8
    %s787 = scalar_lea.vmem [#allocation2], %s786
    %v788 = vld [vmem:[%s787] sm:$0xff]
    %v789 = vld [vmem:[%s787 + $0x8] sm:$0xff]
    %v790 = vld [vmem:[%s787 + $0x10] sm:$0xff]
    %v791 = vadd.f32 %v788, %v743
    %v792 = vxor.u32 %v791, 2147483648
    %v793 = vmul.f32 %v792, 1.442695
    %v794 = vpow.pop %v793
    %v795 = vadd.f32 %v794, 1.0
    %v796 = vrcp.pop %v795
    %v797 = vmul.f32 %v795, %v796
    %v798 = vsub.f32 1.0, %v797
    %v799 = vmul.f32 %v796, %v798
    %v800 = vadd.f32 %v796, %v799
    %vm801 = vweird.f32 %v795
    %vm802 = vweird.f32 %v796
    %vm803 = vmor %vm801, %vm802
    %v804 = vsel %vm803, %v796, %v800
    %v805 = vand.u32 2147483647, %v795
    %vm806 = vcmp.eq.f32.partialorder %v805, 8.507059e+37
    %v807 = vand.u32 %v795, 2147483648
    %v808 = vor.u32 1.1754944e-38, %v807
    %v809 = vsel %vm806, %v808, %v804
    %v810 = vmul.f32 1.0, %v809
    %v811 = vadd.f32 %v789, %v763
    %v812 = vxor.u32 %v811, 2147483648
    %v813 = vmul.f32 %v812, 1.442695
    %v814 = vpow.pop %v813
    %v815 = vadd.f32 %v814, 1.0
    %v816 = vrcp.pop %v815
    %v817 = vmul.f32 %v815, %v816
    %v818 = vsub.f32 1.0, %v817
    %v819 = vmul.f32 %v816, %v818
    %v820 = vadd.f32 %v816, %v819
    %vm821 = vweird.f32 %v815
    %vm822 = vweird.f32 %v816
    %vm823 = vmor %vm821, %vm822
    %v824 = vsel %vm823, %v816, %v820
    %v825 = vand.u32 2147483647, %v815
    %vm826 = vcmp.eq.f32.partialorder %v825, 8.507059e+37
    %v827 = vand.u32 %v815, 2147483648
    %v828 = vor.u32 1.1754944e-38, %v827
    %v829 = vsel %vm826, %v828, %v824
    %v830 = vmul.f32 1.0, %v829
    %v831 = vadd.f32 %v783, %v487
    %v832 = vmul.f32 %v810, %v831
    %v833 = vadd.f32 %v790, %v832
    %v834 = vtanh.pop %v833
    %v835 = vsub.f32 1.0, %v830
    %v836 = vmul.f32 %v835, %v834
    %v837 = vmul.f32 %v830, %v724
    %v838 = vadd.f32 %v836, %v837
    %839 = vmatpush.msra.mxu0 %v360
    %840 = vmatpush.msra.mxu0 %v357
    %841 = vmatpush.msra.mxu0 %v354
    %842 = vmatpush.msra.mxu0 %v351
    %843 = vmatpush.msra.mxu0 %v348
    %844 = vmatpush.msra.mxu0 %v345
    %845 = vmatpush.msra.mxu0 %v342
    %846 = vmatpush.msra.mxu0 %v339
    %847 = vmatpush.msra.mxu0 %v336
    %848 = vmatpush.msra.mxu0 %v333
    %849 = vmatpush.msra.mxu0 %v330
    %850 = vmatpush.msra.mxu0 %v327
    %851 = vmatpush.msra.mxu0 %v324
    %852 = vmatpush.msra.mxu0 %v321
    %853 = vmatpush.msra.mxu0 %v318
    %854 = vmatpush.msra.mxu0 %v315
    %855 = vmatmul.f32.gmra.mxu0 %v838
    %v856 = vpop.f32.mrf.mxu0
    %v857 = vadd.f32 0.0, %v856
    %858 = vdwg.mxu0
    %859 = vmatpush.msra.mxu0 %v361
    %860 = vmatpush.msra.mxu0 %v358
    %861 = vmatpush.msra.mxu0 %v355
    %862 = vmatpush.msra.mxu0 %v352
    %863 = vmatpush.msra.mxu0 %v349
    %864 = vmatpush.msra.mxu0 %v346
    %865 = vmatpush.msra.mxu0 %v343
    %866 = vmatpush.msra.mxu0 %v340
    %867 = vmatpush.msra.mxu0 %v337
    %868 = vmatpush.msra.mxu0 %v334
    %869 = vmatpush.msra.mxu0 %v331
    %870 = vmatpush.msra.mxu0 %v328
    %871 = vmatpush.msra.mxu0 %v325
    %872 = vmatpush.msra.mxu0 %v322
    %873 = vmatpush.msra.mxu0 %v319
    %874 = vmatpush.msra.mxu0 %v316
    %875 = vmatmul.f32.gmra.mxu0 %v838
    %v876 = vpop.f32.mrf.mxu0
    %v877 = vadd.f32 0.0, %v876
    %878 = vdwg.mxu0
    %879 = vmatpush.msra.mxu0 %v362
    %880 = vmatpush.msra.mxu0 %v359
    %881 = vmatpush.msra.mxu0 %v356
    %882 = vmatpush.msra.mxu0 %v353
    %883 = vmatpush.msra.mxu0 %v350
    %884 = vmatpush.msra.mxu0 %v347
    %885 = vmatpush.msra.mxu0 %v344
    %886 = vmatpush.msra.mxu0 %v341
    %887 = vmatpush.msra.mxu0 %v338
    %888 = vmatpush.msra.mxu0 %v335
    %889 = vmatpush.msra.mxu0 %v332
    %890 = vmatpush.msra.mxu0 %v329
    %891 = vmatpush.msra.mxu0 %v326
    %892 = vmatpush.msra.mxu0 %v323
    %893 = vmatpush.msra.mxu0 %v320
    %894 = vmatpush.msra.mxu0 %v317
    %895 = vmatmul.f32.gmra.mxu0 %v838
    %v896 = vpop.f32.mrf.mxu0
    %v897 = vadd.f32 0.0, %v896
    %898 = vdwg.mxu0
    %s899 = smul.u32 4, 3
    %s900 = smul.addr %s899, 8
    %s901 = scalar_lea.vmem [#allocation2], %s900
    %v902 = vld [vmem:[%s901] sm:$0xff]
    %v903 = vld [vmem:[%s901 + $0x8] sm:$0xff]
    %v904 = vld [vmem:[%s901 + $0x10] sm:$0xff]
    %v905 = vadd.f32 %v902, %v857
    %v906 = vxor.u32 %v905, 2147483648
    %v907 = vmul.f32 %v906, 1.442695
    %v908 = vpow.pop %v907
    %v909 = vadd.f32 %v908, 1.0
    %v910 = vrcp.pop %v909
    %v911 = vmul.f32 %v909, %v910
    %v912 = vsub.f32 1.0, %v911
    %v913 = vmul.f32 %v910, %v912
    %v914 = vadd.f32 %v910, %v913
    %vm915 = vweird.f32 %v909
    %vm916 = vweird.f32 %v910
    %vm917 = vmor %vm915, %vm916
    %v918 = vsel %vm917, %v910, %v914
    %v919 = vand.u32 2147483647, %v909
    %vm920 = vcmp.eq.f32.partialorder %v919, 8.507059e+37
    %v921 = vand.u32 %v909, 2147483648
    %v922 = vor.u32 1.1754944e-38, %v921
    %v923 = vsel %vm920, %v922, %v918
    %v924 = vmul.f32 1.0, %v923
    %v925 = vadd.f32 %v903, %v877
    %v926 = vxor.u32 %v925, 2147483648
    %v927 = vmul.f32 %v926, 1.442695
    %v928 = vpow.pop %v927
    %v929 = vadd.f32 %v928, 1.0
    %v930 = vrcp.pop %v929
    %v931 = vmul.f32 %v929, %v930
    %v932 = vsub.f32 1.0, %v931
    %v933 = vmul.f32 %v930, %v932
    %v934 = vadd.f32 %v930, %v933
    %vm935 = vweird.f32 %v929
    %vm936 = vweird.f32 %v930
    %vm937 = vmor %vm935, %vm936
    %v938 = vsel %vm937, %v930, %v934
    %v939 = vand.u32 2147483647, %v929
    %vm940 = vcmp.eq.f32.partialorder %v939, 8.507059e+37
    %v941 = vand.u32 %v929, 2147483648
    %v942 = vor.u32 1.1754944e-38, %v941
    %v943 = vsel %vm940, %v942, %v938
    %v944 = vmul.f32 1.0, %v943
    %v945 = vadd.f32 %v897, %v487
    %v946 = vmul.f32 %v924, %v945
    %v947 = vadd.f32 %v904, %v946
    %v948 = vtanh.pop %v947
    %v949 = vsub.f32 1.0, %v944
    %v950 = vmul.f32 %v949, %v948
    %v951 = vmul.f32 %v944, %v838
    %v952 = vadd.f32 %v950, %v951
    %953 = vmatpush.msra.mxu0 %v360
    %954 = vmatpush.msra.mxu0 %v357
    %955 = vmatpush.msra.mxu0 %v354
    %956 = vmatpush.msra.mxu0 %v351
    %957 = vmatpush.msra.mxu0 %v348
    %958 = vmatpush.msra.mxu0 %v345
    %959 = vmatpush.msra.mxu0 %v342
    %960 = vmatpush.msra.mxu0 %v339
    %961 = vmatpush.msra.mxu0 %v336
    %962 = vmatpush.msra.mxu0 %v333
    %963 = vmatpush.msra.mxu0 %v330
    %964 = vmatpush.msra.mxu0 %v327
    %965 = vmatpush.msra.mxu0 %v324
    %966 = vmatpush.msra.mxu0 %v321
    %967 = vmatpush.msra.mxu0 %v318
    %968 = vmatpush.msra.mxu0 %v315
    %969 = vmatmul.f32.gmra.mxu0 %v952
    %v970 = vpop.f32.mrf.mxu0
    %v971 = vadd.f32 0.0, %v970
    %972 = vdwg.mxu0
    %973 = vmatpush.msra.mxu0 %v361
    %974 = vmatpush.msra.mxu0 %v358
    %975 = vmatpush.msra.mxu0 %v355
    %976 = vmatpush.msra.mxu0 %v352
    %977 = vmatpush.msra.mxu0 %v349
    %978 = vmatpush.msra.mxu0 %v346
    %979 = vmatpush.msra.mxu0 %v343
    %980 = vmatpush.msra.mxu0 %v340
    %981 = vmatpush.msra.mxu0 %v337
    %982 = vmatpush.msra.mxu0 %v334
    %983 = vmatpush.msra.mxu0 %v331
    %984 = vmatpush.msra.mxu0 %v328
    %985 = vmatpush.msra.mxu0 %v325
    %986 = vmatpush.msra.mxu0 %v322
    %987 = vmatpush.msra.mxu0 %v319
    %988 = vmatpush.msra.mxu0 %v316
    %989 = vmatmul.f32.gmra.mxu0 %v952
    %v990 = vpop.f32.mrf.mxu0
    %v991 = vadd.f32 0.0, %v990
    %992 = vdwg.mxu0
    %993 = vmatpush.msra.mxu0 %v362
    %994 = vmatpush.msra.mxu0 %v359
    %995 = vmatpush.msra.mxu0 %v356
    %996 = vmatpush.msra.mxu0 %v353
    %997 = vmatpush.msra.mxu0 %v350
    %998 = vmatpush.msra.mxu0 %v347
    %999 = vmatpush.msra.mxu0 %v344
    %1000 = vmatpush.msra.mxu0 %v341
    %1001 = vmatpush.msra.mxu0 %v338
    %1002 = vmatpush.msra.mxu0 %v335
    %1003 = vmatpush.msra.mxu0 %v332
    %1004 = vmatpush.msra.mxu0 %v329
    %1005 = vmatpush.msra.mxu0 %v326
    %1006 = vmatpush.msra.mxu0 %v323
    %1007 = vmatpush.msra.mxu0 %v320
    %1008 = vmatpush.msra.mxu0 %v317
    %1009 = vmatmul.f32.gmra.mxu0 %v952
    %v1010 = vpop.f32.mrf.mxu0
    %v1011 = vadd.f32 0.0, %v1010
    %1012 = vdwg.mxu0
    %s1013 = smul.u32 5, 3
    %s1014 = smul.addr %s1013, 8
    %s1015 = scalar_lea.vmem [#allocation2], %s1014
    %v1016 = vld [vmem:[%s1015] sm:$0xff]
    %v1017 = vld [vmem:[%s1015 + $0x8] sm:$0xff]
    %v1018 = vld [vmem:[%s1015 + $0x10] sm:$0xff]
    %v1019 = vadd.f32 %v1016, %v971
    %v1020 = vxor.u32 %v1019, 2147483648
    %v1021 = vmul.f32 %v1020, 1.442695
    %v1022 = vpow.pop %v1021
    %v1023 = vadd.f32 %v1022, 1.0
    %v1024 = vrcp.pop %v1023
    %v1025 = vmul.f32 %v1023, %v1024
    %v1026 = vsub.f32 1.0, %v1025
    %v1027 = vmul.f32 %v1024, %v1026
    %v1028 = vadd.f32 %v1024, %v1027
    %vm1029 = vweird.f32 %v1023
    %vm1030 = vweird.f32 %v1024
    %vm1031 = vmor %vm1029, %vm1030
    %v1032 = vsel %vm1031, %v1024, %v1028
    %v1033 = vand.u32 2147483647, %v1023
    %vm1034 = vcmp.eq.f32.partialorder %v1033, 8.507059e+37
    %v1035 = vand.u32 %v1023, 2147483648
    %v1036 = vor.u32 1.1754944e-38, %v1035
    %v1037 = vsel %vm1034, %v1036, %v1032
    %v1038 = vmul.f32 1.0, %v1037
    %v1039 = vadd.f32 %v1017, %v991
    %v1040 = vxor.u32 %v1039, 2147483648
    %v1041 = vmul.f32 %v1040, 1.442695
    %v1042 = vpow.pop %v1041
    %v1043 = vadd.f32 %v1042, 1.0
    %v1044 = vrcp.pop %v1043
    %v1045 = vmul.f32 %v1043, %v1044
    %v1046 = vsub.f32 1.0, %v1045
    %v1047 = vmul.f32 %v1044, %v1046
    %v1048 = vadd.f32 %v1044, %v1047
    %vm1049 = vweird.f32 %v1043
    %vm1050 = vweird.f32 %v1044
    %vm1051 = vmor %vm1049, %vm1050
    %v1052 = vsel %vm1051, %v1044, %v1048
    %v1053 = vand.u32 2147483647, %v1043
    %vm1054 = vcmp.eq.f32.partialorder %v1053, 8.507059e+37
    %v1055 = vand.u32 %v1043, 2147483648
    %v1056 = vor.u32 1.1754944e-38, %v1055
    %v1057 = vsel %vm1054, %v1056, %v1052
    %v1058 = vmul.f32 1.0, %v1057
    %v1059 = vadd.f32 %v1011, %v487
    %v1060 = vmul.f32 %v1038, %v1059
    %v1061 = vadd.f32 %v1018, %v1060
    %v1062 = vtanh.pop %v1061
    %v1063 = vsub.f32 1.0, %v1058
    %v1064 = vmul.f32 %v1063, %v1062
    %v1065 = vmul.f32 %v1058, %v952
    %v1066 = vadd.f32 %v1064, %v1065
    %1067 = vmatpush.msra.mxu0 %v360
    %1068 = vmatpush.msra.mxu0 %v357
    %1069 = vmatpush.msra.mxu0 %v354
    %1070 = vmatpush.msra.mxu0 %v351
    %1071 = vmatpush.msra.mxu0 %v348
    %1072 = vmatpush.msra.mxu0 %v345
    %1073 = vmatpush.msra.mxu0 %v342
    %1074 = vmatpush.msra.mxu0 %v339
    %1075 = vmatpush.msra.mxu0 %v336
    %1076 = vmatpush.msra.mxu0 %v333
    %1077 = vmatpush.msra.mxu0 %v330
    %1078 = vmatpush.msra.mxu0 %v327
    %1079 = vmatpush.msra.mxu0 %v324
    %1080 = vmatpush.msra.mxu0 %v321
    %1081 = vmatpush.msra.mxu0 %v318
    %1082 = vmatpush.msra.mxu0 %v315
    %1083 = vmatmul.f32.gmra.mxu0 %v1066
    %v1084 = vpop.f32.mrf.mxu0
    %v1085 = vadd.f32 0.0, %v1084
    %1086 = vdwg.mxu0
    %1087 = vmatpush.msra.mxu0 %v361
    %1088 = vmatpush.msra.mxu0 %v358
    %1089 = vmatpush.msra.mxu0 %v355
    %1090 = vmatpush.msra.mxu0 %v352
    %1091 = vmatpush.msra.mxu0 %v349
    %1092 = vmatpush.msra.mxu0 %v346
    %1093 = vmatpush.msra.mxu0 %v343
    %1094 = vmatpush.msra.mxu0 %v340
    %1095 = vmatpush.msra.mxu0 %v337
    %1096 = vmatpush.msra.mxu0 %v334
    %1097 = vmatpush.msra.mxu0 %v331
    %1098 = vmatpush.msra.mxu0 %v328
    %1099 = vmatpush.msra.mxu0 %v325
    %1100 = vmatpush.msra.mxu0 %v322
    %1101 = vmatpush.msra.mxu0 %v319
    %1102 = vmatpush.msra.mxu0 %v316
    %1103 = vmatmul.f32.gmra.mxu0 %v1066
    %v1104 = vpop.f32.mrf.mxu0
    %v1105 = vadd.f32 0.0, %v1104
    %1106 = vdwg.mxu0
    %1107 = vmatpush.msra.mxu0 %v362
    %1108 = vmatpush.msra.mxu0 %v359
    %1109 = vmatpush.msra.mxu0 %v356
    %1110 = vmatpush.msra.mxu0 %v353
    %1111 = vmatpush.msra.mxu0 %v350
    %1112 = vmatpush.msra.mxu0 %v347
    %1113 = vmatpush.msra.mxu0 %v344
    %1114 = vmatpush.msra.mxu0 %v341
    %1115 = vmatpush.msra.mxu0 %v338
    %1116 = vmatpush.msra.mxu0 %v335
    %1117 = vmatpush.msra.mxu0 %v332
    %1118 = vmatpush.msra.mxu0 %v329
    %1119 = vmatpush.msra.mxu0 %v326
    %1120 = vmatpush.msra.mxu0 %v323
    %1121 = vmatpush.msra.mxu0 %v320
    %1122 = vmatpush.msra.mxu0 %v317
    %1123 = vmatmul.f32.gmra.mxu0 %v1066
    %v1124 = vpop.f32.mrf.mxu0
    %v1125 = vadd.f32 0.0, %v1124
    %1126 = vdwg.mxu0
    %s1127 = smul.u32 6, 3
    %s1128 = smul.addr %s1127, 8
    %s1129 = scalar_lea.vmem [#allocation2], %s1128
    %v1130 = vld [vmem:[%s1129] sm:$0xff]
    %v1131 = vld [vmem:[%s1129 + $0x8] sm:$0xff]
    %v1132 = vld [vmem:[%s1129 + $0x10] sm:$0xff]
    %v1133 = vadd.f32 %v1130, %v1085
    %v1134 = vxor.u32 %v1133, 2147483648
    %v1135 = vmul.f32 %v1134, 1.442695
    %v1136 = vpow.pop %v1135
    %v1137 = vadd.f32 %v1136, 1.0
    %v1138 = vrcp.pop %v1137
    %v1139 = vmul.f32 %v1137, %v1138
    %v1140 = vsub.f32 1.0, %v1139
    %v1141 = vmul.f32 %v1138, %v1140
    %v1142 = vadd.f32 %v1138, %v1141
    %vm1143 = vweird.f32 %v1137
    %vm1144 = vweird.f32 %v1138
    %vm1145 = vmor %vm1143, %vm1144
    %v1146 = vsel %vm1145, %v1138, %v1142
    %v1147 = vand.u32 2147483647, %v1137
    %vm1148 = vcmp.eq.f32.partialorder %v1147, 8.507059e+37
    %v1149 = vand.u32 %v1137, 2147483648
    %v1150 = vor.u32 1.1754944e-38, %v1149
    %v1151 = vsel %vm1148, %v1150, %v1146
    %v1152 = vmul.f32 1.0, %v1151
    %v1153 = vadd.f32 %v1131, %v1105
    %v1154 = vxor.u32 %v1153, 2147483648
    %v1155 = vmul.f32 %v1154, 1.442695
    %v1156 = vpow.pop %v1155
    %v1157 = vadd.f32 %v1156, 1.0
    %v1158 = vrcp.pop %v1157
    %v1159 = vmul.f32 %v1157, %v1158
    %v1160 = vsub.f32 1.0, %v1159
    %v1161 = vmul.f32 %v1158, %v1160
    %v1162 = vadd.f32 %v1158, %v1161
    %vm1163 = vweird.f32 %v1157
    %vm1164 = vweird.f32 %v1158
    %vm1165 = vmor %vm1163, %vm1164
    %v1166 = vsel %vm1165, %v1158, %v1162
    %v1167 = vand.u32 2147483647, %v1157
    %vm1168 = vcmp.eq.f32.partialorder %v1167, 8.507059e+37
    %v1169 = vand.u32 %v1157, 2147483648
    %v1170 = vor.u32 1.1754944e-38, %v1169
    %v1171 = vsel %vm1168, %v1170, %v1166
    %v1172 = vmul.f32 1.0, %v1171
    %v1173 = vadd.f32 %v1125, %v487
    %v1174 = vmul.f32 %v1152, %v1173
    %v1175 = vadd.f32 %v1132, %v1174
    %v1176 = vtanh.pop %v1175
    %v1177 = vsub.f32 1.0, %v1172
    %v1178 = vmul.f32 %v1177, %v1176
    %v1179 = vmul.f32 %v1172, %v1066
    %v1180 = vadd.f32 %v1178, %v1179
    %1181 = vmatpush.msra.mxu0 %v360
    %1182 = vmatpush.msra.mxu0 %v357
    %1183 = vmatpush.msra.mxu0 %v354
    %1184 = vmatpush.msra.mxu0 %v351
    %1185 = vmatpush.msra.mxu0 %v348
    %1186 = vmatpush.msra.mxu0 %v345
    %1187 = vmatpush.msra.mxu0 %v342
    %1188 = vmatpush.msra.mxu0 %v339
    %1189 = vmatpush.msra.mxu0 %v336
    %1190 = vmatpush.msra.mxu0 %v333
    %1191 = vmatpush.msra.mxu0 %v330
    %1192 = vmatpush.msra.mxu0 %v327
    %1193 = vmatpush.msra.mxu0 %v324
    %1194 = vmatpush.msra.mxu0 %v321
    %1195 = vmatpush.msra.mxu0 %v318
    %1196 = vmatpush.msra.mxu0 %v315
    %1197 = vmatmul.f32.gmra.mxu0 %v1180
    %v1198 = vpop.f32.mrf.mxu0
    %v1199 = vadd.f32 0.0, %v1198
    %1200 = vdwg.mxu0
    %1201 = vmatpush.msra.mxu0 %v361
    %1202 = vmatpush.msra.mxu0 %v358
    %1203 = vmatpush.msra.mxu0 %v355
    %1204 = vmatpush.msra.mxu0 %v352
    %1205 = vmatpush.msra.mxu0 %v349
    %1206 = vmatpush.msra.mxu0 %v346
    %1207 = vmatpush.msra.mxu0 %v343
    %1208 = vmatpush.msra.mxu0 %v340
    %1209 = vmatpush.msra.mxu0 %v337
    %1210 = vmatpush.msra.mxu0 %v334
    %1211 = vmatpush.msra.mxu0 %v331
    %1212 = vmatpush.msra.mxu0 %v328
    %1213 = vmatpush.msra.mxu0 %v325
    %1214 = vmatpush.msra.mxu0 %v322
    %1215 = vmatpush.msra.mxu0 %v319
    %1216 = vmatpush.msra.mxu0 %v316
    %1217 = vmatmul.f32.gmra.mxu0 %v1180
    %v1218 = vpop.f32.mrf.mxu0
    %v1219 = vadd.f32 0.0, %v1218
    %1220 = vdwg.mxu0
    %1221 = vmatpush.msra.mxu0 %v362
    %1222 = vmatpush.msra.mxu0 %v359
    %1223 = vmatpush.msra.mxu0 %v356
    %1224 = vmatpush.msra.mxu0 %v353
    %1225 = vmatpush.msra.mxu0 %v350
    %1226 = vmatpush.msra.mxu0 %v347
    %1227 = vmatpush.msra.mxu0 %v344
    %1228 = vmatpush.msra.mxu0 %v341
    %1229 = vmatpush.msra.mxu0 %v338
    %1230 = vmatpush.msra.mxu0 %v335
    %1231 = vmatpush.msra.mxu0 %v332
    %1232 = vmatpush.msra.mxu0 %v329
    %1233 = vmatpush.msra.mxu0 %v326
    %1234 = vmatpush.msra.mxu0 %v323
    %1235 = vmatpush.msra.mxu0 %v320
    %1236 = vmatpush.msra.mxu0 %v317
    %1237 = vmatmul.f32.gmra.mxu0 %v1180
    %v1238 = vpop.f32.mrf.mxu0
    %v1239 = vadd.f32 0.0, %v1238
    %1240 = vdwg.mxu0
    %s1241 = smul.u32 7, 3
    %s1242 = smul.addr %s1241, 8
    %s1243 = scalar_lea.vmem [#allocation2], %s1242
    %v1244 = vld [vmem:[%s1243] sm:$0xff]
    %v1245 = vld [vmem:[%s1243 + $0x8] sm:$0xff]
    %v1246 = vld [vmem:[%s1243 + $0x10] sm:$0xff]
    %v1247 = vadd.f32 %v1244, %v1199
    %v1248 = vxor.u32 %v1247, 2147483648
    %v1249 = vmul.f32 %v1248, 1.442695
    %v1250 = vpow.pop %v1249
    %v1251 = vadd.f32 %v1250, 1.0
    %v1252 = vrcp.pop %v1251
    %v1253 = vmul.f32 %v1251, %v1252
    %v1254 = vsub.f32 1.0, %v1253
    %v1255 = vmul.f32 %v1252, %v1254
    %v1256 = vadd.f32 %v1252, %v1255
    %vm1257 = vweird.f32 %v1251
    %vm1258 = vweird.f32 %v1252
    %vm1259 = vmor %vm1257, %vm1258
    %v1260 = vsel %vm1259, %v1252, %v1256
    %v1261 = vand.u32 2147483647, %v1251
    %vm1262 = vcmp.eq.f32.partialorder %v1261, 8.507059e+37
    %v1263 = vand.u32 %v1251, 2147483648
    %v1264 = vor.u32 1.1754944e-38, %v1263
    %v1265 = vsel %vm1262, %v1264, %v1260
    %v1266 = vmul.f32 1.0, %v1265
    %v1267 = vadd.f32 %v1245, %v1219
    %v1268 = vxor.u32 %v1267, 2147483648
    %v1269 = vmul.f32 %v1268, 1.442695
    %v1270 = vpow.pop %v1269
    %v1271 = vadd.f32 %v1270, 1.0
    %v1272 = vrcp.pop %v1271
    %v1273 = vmul.f32 %v1271, %v1272
    %v1274 = vsub.f32 1.0, %v1273
    %v1275 = vmul.f32 %v1272, %v1274
    %v1276 = vadd.f32 %v1272, %v1275
    %vm1277 = vweird.f32 %v1271
    %vm1278 = vweird.f32 %v1272
    %vm1279 = vmor %vm1277, %vm1278
    %v1280 = vsel %vm1279, %v1272, %v1276
    %v1281 = vand.u32 2147483647, %v1271
    %vm1282 = vcmp.eq.f32.partialorder %v1281, 8.507059e+37
    %v1283 = vand.u32 %v1271, 2147483648
    %v1284 = vor.u32 1.1754944e-38, %v1283
    %v1285 = vsel %vm1282, %v1284, %v1280
    %v1286 = vmul.f32 1.0, %v1285
    %v1287 = vadd.f32 %v1239, %v487
    %v1288 = vmul.f32 %v1266, %v1287
    %v1289 = vadd.f32 %v1246, %v1288
    %v1290 = vtanh.pop %v1289
    %v1291 = vsub.f32 1.0, %v1286
    %v1292 = vmul.f32 %v1291, %v1290
    %v1293 = vmul.f32 %v1286, %v1180
    %v1294 = vadd.f32 %v1292, %v1293
    %v1295 = vld [vmem:[%s6] sm:$0x1]
    %v1297 = vperm.slane %v1295, 0
    %1299 = vmatpush.msra.mxu0 %v379
    %1300 = vmatpush.msra.mxu0 %v378
    %1301 = vmatpush.msra.mxu0 %v377
    %1302 = vmatpush.msra.mxu0 %v376
    %1303 = vmatpush.msra.mxu0 %v375
    %1304 = vmatpush.msra.mxu0 %v374
    %1305 = vmatpush.msra.mxu0 %v373
    %1306 = vmatpush.msra.mxu0 %v372
    %1307 = vmatpush.msra.mxu0 %v371
    %1308 = vmatpush.msra.mxu0 %v370
    %1309 = vmatpush.msra.mxu0 %v369
    %1310 = vmatpush.msra.mxu0 %v368
    %1311 = vmatpush.msra.mxu0 %v367
    %1312 = vmatpush.msra.mxu0 %v366
    %1313 = vmatpush.msra.mxu0 %v365
    %1314 = vmatpush.msra.mxu0 %v364
    %1315 = vmatmul.f32.gmra.mxu0 %v1294
    %v1316 = vpop.f32.mrf.mxu0
    %v1317 = vadd.f32 %v1297, %v1316
    %1318 = vdwg.mxu0
    %1319 = vst [vmem:[#allocation12] sm:$0xff] %v1317
    // Predicated region
    $region50: #{tpu_custom_call.1} parent=1 // pred_check
      _
    $region51: #{tpu_custom_call.1} parent=1 // pred_check_branch
      %1321 = sbr.rel (0) target = $region53
    $region52: #{tpu_custom_call.1} parent=1 // pred_region
      %1323 = vsyncadd [#allocation5], 0
      %s1325 = sshll.u32 [#allocation12], 4
      %s1326 = int_to_ptr.vmem [resolvable:$true] %s1325
      %s1327 = sshll.u32 %s7, 4
      %s1328 = int_to_ptr.hbm [resolvable:$true] %s1327
      %1330 = dma.vmem_to_hbm [thread:$0]  %s1326, 128, %s1328, [#allocation5]
    $region53: #{tpu_custom_call.1} parent=1 // pred_fallthru
      _
    // Predicated region
    $region54: #{tpu_custom_call.1} parent=1 // pred_check
      _
    $region55: #{tpu_custom_call.1} parent=1 // pred_check_branch
      %1332 = sbr.rel (0) target = $region57
    $region56: #{tpu_custom_call.1} parent=1 // pred_region
      %1334 = dma.done [#allocation5], 128
    $region57: #{tpu_custom_call.1} parent=1 // pred_fallthru
      _
    %1335 = vsyncpa [#allocation4], 1
    %1336 = vsyncpa [#allocation7], 1
    %1337 = vsyncpa [#allocation10], 1
    %1338 = vsyncpa [#allocation5], 1

</llo_original>
